<compile_context>
chip_gen: v7x
topology: tpu7x:2x2x1
jax: 0.10.0
libtpu: 0.0.40
codegen_flags: <defaults>
</compile_context>

<pallas_src>
import math

import numpy as np
import jax
import jax.numpy as jnp
from jax import lax
from jax.experimental import pallas as pl
from jax.experimental.pallas import tpu as pltpu


def _round_up(v, m):
    return ((v + m - 1) // m) * m


def _make_kernel(num_heads, head_dim, head_dim_pad, f_true, f_pad):
    scale = 1.0 / math.sqrt(head_dim)
    hd = num_heads * head_dim_pad

    def kernel(xq_ref, xkv_ref, mask_ref, ln_s_ref, ln_b_ref,
               wq_ref, bq_ref, wkv_ref, bkv_ref, wo_ref, bo_ref, o_ref):
        # Validity mask for the zero-padded feature lanes.
        lane_valid = lax.broadcasted_iota(jnp.int32, (1, f_pad), 1) < f_true

        def mean_abs_norm(x):
            # x: (rows, f_pad) f32, padded lanes are zero. Stats use true F.
            mean = jnp.sum(x, axis=-1, keepdims=True) * (1.0 / f_true)
            centered = jnp.where(lane_valid, x - mean, 0.0)
            denom = (jnp.sum(jnp.abs(centered), axis=-1, keepdims=True)
                     * (1.0 / f_true) + 1e-5)
            y = centered * pl.reciprocal(denom, approx=True)     # EUP, not VPU div
            y = y * ln_s_ref[...] + ln_b_ref[...]
            return y.astype(jnp.bfloat16)                        # MXU operand

        normed_q = mean_abs_norm(xq_ref[0].astype(jnp.float32))    # (tq, F_pad)
        normed_kv = mean_abs_norm(xkv_ref[0].astype(jnp.float32))  # (T_pad, F_pad)

        # Fused projections (bf16 operands, f32 accumulation).
        q_all = (jnp.dot(normed_q, wq_ref[...],
                         preferred_element_type=jnp.float32)
                 + bq_ref[...]).astype(jnp.bfloat16)               # (tq, H*Dh_pad)
        kv_all = (jnp.dot(normed_kv, wkv_ref[...],
                          preferred_element_type=jnp.float32)
                  + bkv_ref[...]).astype(jnp.bfloat16)             # (T_pad, 2*H*Dh_pad)
        k_all = kv_all[:, :hd]                                     # 128-aligned slices
        v_all = kv_all[:, hd:]

        key_valid = mask_ref[0] != 0                               # (1, T_pad)

        acc = jnp.zeros((q_all.shape[0], f_pad), jnp.float32)
        for h in range(num_heads):
            lo = h * head_dim_pad                                  # multiple of 128
            qh = q_all[:, lo:lo + head_dim_pad]
            kh = k_all[:, lo:lo + head_dim_pad]
            vh = v_all[:, lo:lo + head_dim_pad]
            # q @ k^T without materializing a transpose.
            s = lax.dot_general(qh, kh, (((1,), (1,)), ((), ())),
                                preferred_element_type=jnp.float32) * scale
            s = jnp.where(key_valid, s, jnp.float32(-1e30))
            m = jnp.max(s, axis=-1, keepdims=True)
            p = jnp.exp(s - m)
            p = p * pl.reciprocal(jnp.sum(p, axis=-1, keepdims=True), approx=True)
            ctx = jnp.dot(p.astype(jnp.bfloat16), vh,
                          preferred_element_type=jnp.float32)      # (tq, Dh_pad)
            # Fold the output projection in per head (no lane concat).
            acc = acc + jnp.dot(ctx.astype(jnp.bfloat16), wo_ref[h],
                                preferred_element_type=jnp.float32)
        o_ref[0] = (acc + bo_ref[...]).astype(o_ref.dtype)

    return kernel


def conformer_mhsa_quant(x, sequence_mask, params, num_heads, *, max_q_tile=256):
    """x: (B, T, F) float32, sequence_mask: (B, T) bool (True == inside seq)."""
    B, T, F = x.shape
    assert F % num_heads == 0
    assert max_q_tile % 8 == 0
    Dh = F // num_heads
    F_pad = _round_up(F, 128)
    Dh_pad = _round_up(Dh, 128)
    HD = num_heads * Dh_pad

    # Query-tile blocking (bounds the score matrix to (tq, T_pad) per step).
    if T <= max_q_tile:
        tq = _round_up(T, 8)
        T_pad = tq
    else:
        tq = max_q_tile
        T_pad = _round_up(T, tq)
    n_q_tiles = T_pad // tq

    # Zero-pad activations and key mask (padded keys are masked out).
    x_p = jnp.zeros((B, T_pad, F_pad), x.dtype).at[:, :T, :F].set(x)
    mask_p = (jnp.zeros((B, 1, T_pad), jnp.int32)
              .at[:, 0, :T].set(sequence_mask.astype(jnp.int32)))

    # --- weight prep: fused, per-head lane-padded, pre-transposed, bf16 ------
    def head_split_w(w):
        # torch Linear weight (F_out, F_in) -> (F_pad, H*Dh_pad), head h in
        # columns [h*Dh_pad, h*Dh_pad + Dh).
        wt = w.T
        out = jnp.zeros((F_pad, HD), jnp.float32)
        for h in range(num_heads):
            out = out.at[:F, h * Dh_pad:h * Dh_pad + Dh].set(
                wt[:, h * Dh:(h + 1) * Dh])
        return out

    def head_split_b(b):
        out = jnp.zeros((1, HD), jnp.float32)
        for h in range(num_heads):
            out = out.at[0, h * Dh_pad:h * Dh_pad + Dh].set(b[h * Dh:(h + 1) * Dh])
        return out

    wq_f = head_split_w(params["wq"]).astype(jnp.bfloat16)
    bq_f = head_split_b(params["bq"])
    wkv_f = jnp.concatenate(
        [head_split_w(params["wk"]), head_split_w(params["wv"])],
        axis=1).astype(jnp.bfloat16)
    bkv_f = jnp.concatenate([head_split_b(params["bk"]), head_split_b(params["bv"])],
                            axis=1)

    wo_t = params["wo"].T                                   # (F_in, F_out)
    wo_h = jnp.zeros((num_heads, Dh_pad, F_pad), jnp.float32)
    for h in range(num_heads):
        wo_h = wo_h.at[h, :Dh, :F].set(wo_t[h * Dh:(h + 1) * Dh, :])
    wo_h = wo_h.astype(jnp.bfloat16)
    bo = jnp.zeros((1, F_pad), jnp.float32).at[0, :F].set(params["bo"])
    ln_s = jnp.zeros((1, F_pad), jnp.float32).at[0, :F].set(params["ln_scale"])
    ln_b = jnp.zeros((1, F_pad), jnp.float32).at[0, :F].set(params["ln_bias"])

    # Explicit scoped-VMEM limit from the per-step footprint (double-buffered
    # IO blocks + resident weights + intermediates), with headroom.
    est = (
        2 * 4 * (tq * F_pad + T_pad * F_pad + tq * F_pad)        # x_q, x_kv, out
        + 2 * 4 * T_pad                                          # mask
        + 2 * 2 * (wq_f.size + wkv_f.size + wo_h.size)           # bf16 weights
        + 2 * 4 * (bq_f.size + bkv_f.size + bo.size + ln_s.size + ln_b.size)
        + 6 * (tq + T_pad) * F_pad                               # normed f32+bf16
        + 6 * (tq * HD + T_pad * 2 * HD)                         # q / kv
        + 4 * (2 * tq * T_pad + tq * Dh_pad + tq * F_pad)        # scores, p, ctx, acc
    )
    vmem_limit = int(min(64 * 2 ** 20, max(32 * 2 ** 20, 2 * est)))

    kernel = _make_kernel(num_heads, Dh, Dh_pad, F, F_pad)

    def const_spec(shape):
        return pl.BlockSpec(shape, lambda b, qi: (0,) * len(shape))

    out_p = pl.pallas_call(
        kernel,
        out_shape=jax.ShapeDtypeStruct((B, T_pad, F_pad), x.dtype),
        grid_spec=pltpu.PrefetchScalarGridSpec(
            num_scalar_prefetch=0,
            grid=(B, n_q_tiles),
            in_specs=[
                pl.BlockSpec((1, tq, F_pad), lambda b, qi: (b, qi, 0)),    # x (query tile)
                pl.BlockSpec((1, T_pad, F_pad), lambda b, qi: (b, 0, 0)),  # x (keys/values)
                pl.BlockSpec((1, 1, T_pad), lambda b, qi: (b, 0, 0)),      # key mask
                const_spec((1, F_pad)), const_spec((1, F_pad)),            # ln scale / bias
                const_spec((F_pad, HD)), const_spec((1, HD)),              # Wq / bq (fused heads)
                const_spec((F_pad, 2 * HD)), const_spec((1, 2 * HD)),      # Wkv / bkv (fused)
                const_spec((num_heads, Dh_pad, F_pad)),                    # Wo (per head)
                const_spec((1, F_pad)),                                    # bo
            ],
            out_specs=pl.BlockSpec((1, tq, F_pad), lambda b, qi: (b, qi, 0)),
        ),
        compiler_params=pltpu.CompilerParams(
            dimension_semantics=("parallel", "parallel"),
            vmem_limit_bytes=vmem_limit),
    )(x_p, x_p, mask_p, ln_s, ln_b, wq_f, bq_f, wkv_f, bkv_f, wo_h, bo)

    return out_p[:, :T, :F]


def reference_forward(x, sequence_mask, params, num_heads):
    """Pure-JAX f32 reference mirroring the PyTorch forward (eval mode)."""
    B, T, F = x.shape
    Dh = F // num_heads
    centered = x - jnp.mean(x, axis=-1, keepdims=True)
    denom = jnp.sum(jnp.abs(centered), axis=-1, keepdims=True) / F + 1e-5
    y = centered / denom * params["ln_scale"] + params["ln_bias"]

    q = y @ params["wq"].T + params["bq"]
    k = y @ params["wk"].T + params["bk"]
    v = y @ params["wv"].T + params["bv"]
    q = q.reshape(B, T, num_heads, Dh).transpose(0, 2, 1, 3)
    k = k.reshape(B, T, num_heads, Dh).transpose(0, 2, 1, 3)
    v = v.reshape(B, T, num_heads, Dh).transpose(0, 2, 1, 3)
    scores = jnp.einsum("bhqd,bhkd->bhqk", q, k) / math.sqrt(Dh)
    key_valid = sequence_mask[:, None, None, :]
    scores = jnp.where(key_valid, scores, -1e30)
    p = jax.nn.softmax(scores, axis=-1)
    att = jnp.einsum("bhqk,bhkd->bhqd", p, v)
    att = att.transpose(0, 2, 1, 3).reshape(B, T, F)
    return att @ params["wo"].T + params["bo"]


def _make_params(key, F):
    keys = jax.random.split(key, 10)
    s = 1.0 / math.sqrt(F)
    return {
        "ln_scale": 1.0 + 0.1 * jax.random.normal(keys[9], (F,), jnp.float32),
        "ln_bias": 0.1 * jax.random.normal(keys[0], (F,), jnp.float32),
        "wq": jax.random.uniform(keys[1], (F, F), jnp.float32, -s, s),
        "bq": jax.random.uniform(keys[2], (F,), jnp.float32, -s, s),
        "wk": jax.random.uniform(keys[3], (F, F), jnp.float32, -s, s),
        "bk": jax.random.uniform(keys[4], (F,), jnp.float32, -s, s),
        "wv": jax.random.uniform(keys[5], (F, F), jnp.float32, -s, s),
        "bv": jax.random.uniform(keys[6], (F,), jnp.float32, -s, s),
        "wo": jax.random.uniform(keys[7], (F, F), jnp.float32, -s, s),
        "bo": jax.random.uniform(keys[8], (F,), jnp.float32, -s, s),
    }


if __name__ == "__main__":
    key = jax.random.PRNGKey(0)
    kp, k1, k2 = jax.random.split(key, 3)

    # bf16 MXU operands -> looser tolerance than pure-f32 (f32 accumulation,
    # f32 LN stats and softmax stats are kept).
    RTOL = ATOL = 3e-2

    # --- test 1: single query tile path --------------------------------------
    B, T, F, H = 2, 8, 32, 4
    params = _make_params(kp, F)
    x = jax.random.normal(k1, (B, T, F), dtype=jnp.float32)
    lengths = jnp.array([T, 5], dtype=jnp.int32)
    sequence_mask = jnp.arange(T)[None, :] < lengths[:, None]
    out = jax.block_until_ready(conformer_mhsa_quant(x, sequence_mask, params, H))
    ref = reference_forward(x, sequence_mask, params, H)
    np.testing.assert_allclose(np.asarray(out), np.asarray(ref), rtol=RTOL, atol=ATOL)

    # --- test 2: multi query-tile path (T padded to 24, tq=8, 3 tiles) -------
    B2, T2 = 2, 20
    x2 = jax.random.normal(k2, (B2, T2, F), dtype=jnp.float32)
    lengths2 = jnp.array([T2, 13], dtype=jnp.int32)
    sequence_mask2 = jnp.arange(T2)[None, :] < lengths2[:, None]
    out2 = jax.block_until_ready(
        conformer_mhsa_quant(x2, sequence_mask2, params, H, max_q_tile=8))
    ref2 = reference_forward(x2, sequence_mask2, params, H)
    np.testing.assert_allclose(np.asarray(out2), np.asarray(ref2), rtol=RTOL, atol=ATOL)

    print("KERNEL_OK")
</pallas_src>

<mosaic_0001>
module attributes {stable_mosaic.version = 11 : i64} {
  func.func @kernel(%arg0: i32, %arg1: i32, %arg2: memref<1x8x128xf32, #tpu.memory_space<vmem>>, %arg3: memref<1x8x128xf32, #tpu.memory_space<vmem>>, %arg4: memref<1x1x8xi32, #tpu.memory_space<vmem>>, %arg5: memref<1x128xf32, #tpu.memory_space<vmem>>, %arg6: memref<1x128xf32, #tpu.memory_space<vmem>>, %arg7: memref<128x512xbf16, #tpu.memory_space<vmem>>, %arg8: memref<1x512xf32, #tpu.memory_space<vmem>>, %arg9: memref<128x1024xbf16, #tpu.memory_space<vmem>>, %arg10: memref<1x1024xf32, #tpu.memory_space<vmem>>, %arg11: memref<4x128x128xbf16, #tpu.memory_space<vmem>>, %arg12: memref<1x128xf32, #tpu.memory_space<vmem>>, %arg13: memref<1x8x128xf32, #tpu.memory_space<vmem>>) attributes {dimension_semantics = [#tpu.dimension_semantics<parallel>, #tpu.dimension_semantics<parallel>], iteration_bounds = array<i64: 2, 1>, scalar_prefetch = 0 : i64, scratch_operands = 0 : i64, tpu.core_type = #tpu.core_type<tc>, window_params = [{transform_indices = @transform_0, window_bounds = array<i64: 1, 8, 128>}, {transform_indices = @transform_1, window_bounds = array<i64: 1, 8, 128>}, {transform_indices = @transform_2, window_bounds = array<i64: 1, 1, 8>}, {pipeline_mode = #tpu.pipeline_mode<synchronous>, transform_indices = @transform_3, window_bounds = array<i64: 1, 128>}, {pipeline_mode = #tpu.pipeline_mode<synchronous>, transform_indices = @transform_4, window_bounds = array<i64: 1, 128>}, {pipeline_mode = #tpu.pipeline_mode<synchronous>, transform_indices = @transform_5, window_bounds = array<i64: 128, 512>}, {pipeline_mode = #tpu.pipeline_mode<synchronous>, transform_indices = @transform_6, window_bounds = array<i64: 1, 512>}, {pipeline_mode = #tpu.pipeline_mode<synchronous>, transform_indices = @transform_7, window_bounds = array<i64: 128, 1024>}, {pipeline_mode = #tpu.pipeline_mode<synchronous>, transform_indices = @transform_8, window_bounds = array<i64: 1, 1024>}, {pipeline_mode = #tpu.pipeline_mode<synchronous>, transform_indices = @transform_9, window_bounds = array<i64: 4, 128, 128>}, {pipeline_mode = #tpu.pipeline_mode<synchronous>, transform_indices = @transform_10, window_bounds = array<i64: 1, 128>}, {transform_indices = @transform_11, window_bounds = array<i64: 1, 8, 128>}]} {
    %0 = tpu.iota {dimensions = array<i32: 1>} : vector<1x128xi32>
    %c32_i32 = arith.constant 32 : i32
    %1 = vector.broadcast %c32_i32 : i32 to vector<1x128xi32>
    %2 = arith.cmpi slt, %0, %1 : vector<1x128xi32>
    %c0 = arith.constant 0 : index
    %c0_0 = arith.constant 0 : index
    %c0_1 = arith.constant 0 : index
    %3 = vector.load %arg2[%c0, %c0_0, %c0_1] : memref<1x8x128xf32, #tpu.memory_space<vmem>>, vector<1x8x128xf32>
    %4 = vector.shape_cast %3 : vector<1x8x128xf32> to vector<8x128xf32>
    %cst = arith.constant dense<0.000000e+00> : vector<8xf32>
    %5 = vector.multi_reduction <add>, %4, %cst [1] : vector<8x128xf32> to vector<8xf32>
    %6 = vector.shape_cast %5 : vector<8xf32> to vector<8x1xf32>
    %cst_2 = arith.constant 3.125000e-02 : f32
    %7 = vector.broadcast %cst_2 : f32 to vector<8x1xf32>
    %8 = arith.mulf %6, %7 : vector<8x1xf32>
    %9 = vector.broadcast %8 : vector<8x1xf32> to vector<8x128xf32>
    %10 = arith.subf %4, %9 : vector<8x128xf32>
    %cst_3 = arith.constant 0.000000e+00 : f32
    %11 = vector.shape_cast %2 : vector<1x128xi1> to vector<1x128xi1>
    %12 = vector.broadcast %11 : vector<1x128xi1> to vector<8x128xi1>
    %13 = vector.broadcast %cst_3 : f32 to vector<8x128xf32>
    %14 = arith.select %12, %10, %13 : vector<8x128xi1>, vector<8x128xf32>
    %15 = math.absf %14 : vector<8x128xf32>
    %cst_4 = arith.constant dense<0.000000e+00> : vector<8xf32>
    %16 = vector.multi_reduction <add>, %15, %cst_4 [1] : vector<8x128xf32> to vector<8xf32>
    %17 = vector.shape_cast %16 : vector<8xf32> to vector<8x1xf32>
    %cst_5 = arith.constant 3.125000e-02 : f32
    %18 = vector.broadcast %cst_5 : f32 to vector<8x1xf32>
    %19 = arith.mulf %17, %18 : vector<8x1xf32>
    %cst_6 = arith.constant 9.99999974E-6 : f32
    %20 = vector.broadcast %cst_6 : f32 to vector<8x1xf32>
    %21 = arith.addf %19, %20 : vector<8x1xf32>
    %22 = tpu.reciprocal %21 {approx = true} : vector<8x1xf32> -> vector<8x1xf32>
    %23 = vector.broadcast %22 : vector<8x1xf32> to vector<8x128xf32>
    %24 = arith.mulf %14, %23 : vector<8x128xf32>
    %c0_7 = arith.constant 0 : index
    %c0_8 = arith.constant 0 : index
    %25 = vector.load %arg5[%c0_7, %c0_8] : memref<1x128xf32, #tpu.memory_space<vmem>>, vector<1x128xf32>
    %26 = vector.broadcast %25 : vector<1x128xf32> to vector<8x128xf32>
    %27 = arith.mulf %24, %26 : vector<8x128xf32>
    %c0_9 = arith.constant 0 : index
    %c0_10 = arith.constant 0 : index
    %28 = vector.load %arg6[%c0_9, %c0_10] : memref<1x128xf32, #tpu.memory_space<vmem>>, vector<1x128xf32>
    %29 = vector.broadcast %28 : vector<1x128xf32> to vector<8x128xf32>
    %30 = arith.addf %27, %29 : vector<8x128xf32>
    %31 = arith.truncf %30 : vector<8x128xf32> to vector<8x128xbf16>
    %c0_11 = arith.constant 0 : index
    %c0_12 = arith.constant 0 : index
    %c0_13 = arith.constant 0 : index
    %32 = vector.load %arg3[%c0_11, %c0_12, %c0_13] : memref<1x8x128xf32, #tpu.memory_space<vmem>>, vector<1x8x128xf32>
    %33 = vector.shape_cast %32 : vector<1x8x128xf32> to vector<8x128xf32>
    %cst_14 = arith.constant dense<0.000000e+00> : vector<8xf32>
    %34 = vector.multi_reduction <add>, %33, %cst_14 [1] : vector<8x128xf32> to vector<8xf32>
    %35 = vector.shape_cast %34 : vector<8xf32> to vector<8x1xf32>
    %cst_15 = arith.constant 3.125000e-02 : f32
    %36 = vector.broadcast %cst_15 : f32 to vector<8x1xf32>
    %37 = arith.mulf %35, %36 : vector<8x1xf32>
    %38 = vector.broadcast %37 : vector<8x1xf32> to vector<8x128xf32>
    %39 = arith.subf %33, %38 : vector<8x128xf32>
    %cst_16 = arith.constant 0.000000e+00 : f32
    %40 = vector.shape_cast %2 : vector<1x128xi1> to vector<1x128xi1>
    %41 = vector.broadcast %40 : vector<1x128xi1> to vector<8x128xi1>
    %42 = vector.broadcast %cst_16 : f32 to vector<8x128xf32>
    %43 = arith.select %41, %39, %42 : vector<8x128xi1>, vector<8x128xf32>
    %44 = math.absf %43 : vector<8x128xf32>
    %cst_17 = arith.constant dense<0.000000e+00> : vector<8xf32>
    %45 = vector.multi_reduction <add>, %44, %cst_17 [1] : vector<8x128xf32> to vector<8xf32>
    %46 = vector.shape_cast %45 : vector<8xf32> to vector<8x1xf32>
    %cst_18 = arith.constant 3.125000e-02 : f32
    %47 = vector.broadcast %cst_18 : f32 to vector<8x1xf32>
    %48 = arith.mulf %46, %47 : vector<8x1xf32>
    %cst_19 = arith.constant 9.99999974E-6 : f32
    %49 = vector.broadcast %cst_19 : f32 to vector<8x1xf32>
    %50 = arith.addf %48, %49 : vector<8x1xf32>
    %51 = tpu.reciprocal %50 {approx = true} : vector<8x1xf32> -> vector<8x1xf32>
    %52 = vector.broadcast %51 : vector<8x1xf32> to vector<8x128xf32>
    %53 = arith.mulf %43, %52 : vector<8x128xf32>
    %c0_20 = arith.constant 0 : index
    %c0_21 = arith.constant 0 : index
    %54 = vector.load %arg5[%c0_20, %c0_21] : memref<1x128xf32, #tpu.memory_space<vmem>>, vector<1x128xf32>
    %55 = vector.broadcast %54 : vector<1x128xf32> to vector<8x128xf32>
    %56 = arith.mulf %53, %55 : vector<8x128xf32>
    %c0_22 = arith.constant 0 : index
    %c0_23 = arith.constant 0 : index
    %57 = vector.load %arg6[%c0_22, %c0_23] : memref<1x128xf32, #tpu.memory_space<vmem>>, vector<1x128xf32>
    %58 = vector.broadcast %57 : vector<1x128xf32> to vector<8x128xf32>
    %59 = arith.addf %56, %58 : vector<8x128xf32>
    %60 = arith.truncf %59 : vector<8x128xf32> to vector<8x128xbf16>
    %c0_24 = arith.constant 0 : index
    %c0_25 = arith.constant 0 : index
    %61 = vector.load %arg7[%c0_24, %c0_25] : memref<128x512xbf16, #tpu.memory_space<vmem>>, vector<128x512xbf16>
    %cst_26 = arith.constant dense<0.000000e+00> : vector<8x512xf32>
    %62 = tpu.matmul %31, %61, %cst_26 {dimension_numbers = #tpu.dot_dimension_numbers<[1], [0], [0], [1], [0, 0, 1, 1], [], []>} : vector<8x128xbf16>, vector<128x512xbf16>, vector<8x512xf32> -> vector<8x512xf32>
    %c0_27 = arith.constant 0 : index
    %c0_28 = arith.constant 0 : index
    %63 = vector.load %arg8[%c0_27, %c0_28] : memref<1x512xf32, #tpu.memory_space<vmem>>, vector<1x512xf32>
    %64 = vector.broadcast %63 : vector<1x512xf32> to vector<8x512xf32>
    %65 = arith.addf %62, %64 : vector<8x512xf32>
    %66 = arith.truncf %65 : vector<8x512xf32> to vector<8x512xbf16>
    %c0_29 = arith.constant 0 : index
    %c0_30 = arith.constant 0 : index
    %67 = vector.load %arg9[%c0_29, %c0_30] : memref<128x1024xbf16, #tpu.memory_space<vmem>>, vector<128x1024xbf16>
    %cst_31 = arith.constant dense<0.000000e+00> : vector<8x1024xf32>
    %68 = tpu.matmul %60, %67, %cst_31 {dimension_numbers = #tpu.dot_dimension_numbers<[1], [0], [0], [1], [0, 0, 1, 1], [], []>} : vector<8x128xbf16>, vector<128x1024xbf16>, vector<8x1024xf32> -> vector<8x1024xf32>
    %c0_32 = arith.constant 0 : index
    %c0_33 = arith.constant 0 : index
    %69 = vector.load %arg10[%c0_32, %c0_33] : memref<1x1024xf32, #tpu.memory_space<vmem>>, vector<1x1024xf32>
    %70 = vector.broadcast %69 : vector<1x1024xf32> to vector<8x1024xf32>
    %71 = arith.addf %68, %70 : vector<8x1024xf32>
    %72 = arith.truncf %71 : vector<8x1024xf32> to vector<8x1024xbf16>
    %73 = vector.extract_strided_slice %72 {offsets = [0, 0], sizes = [8, 512], strides = [1, 1]} : vector<8x1024xbf16> to vector<8x512xbf16>
    %74 = vector.extract_strided_slice %72 {offsets = [0, 512], sizes = [8, 512], strides = [1, 1]} : vector<8x1024xbf16> to vector<8x512xbf16>
    %c0_34 = arith.constant 0 : index
    %c0_35 = arith.constant 0 : index
    %c0_36 = arith.constant 0 : index
    %75 = vector.load %arg4[%c0_34, %c0_35, %c0_36] : memref<1x1x8xi32, #tpu.memory_space<vmem>>, vector<1x1x8xi32>
    %76 = vector.shape_cast %75 : vector<1x1x8xi32> to vector<1x8xi32>
    %c0_i32 = arith.constant 0 : i32
    %77 = vector.broadcast %c0_i32 : i32 to vector<1x8xi32>
    %78 = arith.cmpi ne, %76, %77 : vector<1x8xi32>
    %cst_37 = arith.constant 0.000000e+00 : f32
    %79 = vector.broadcast %cst_37 : f32 to vector<8x128xf32>
    %80 = vector.extract_strided_slice %66 {offsets = [0, 0], sizes = [8, 128], strides = [1, 1]} : vector<8x512xbf16> to vector<8x128xbf16>
    %81 = vector.extract_strided_slice %73 {offsets = [0, 0], sizes = [8, 128], strides = [1, 1]} : vector<8x512xbf16> to vector<8x128xbf16>
    %82 = vector.extract_strided_slice %74 {offsets = [0, 0], sizes = [8, 128], strides = [1, 1]} : vector<8x512xbf16> to vector<8x128xbf16>
    %cst_38 = arith.constant dense<0.000000e+00> : vector<8x8xf32>
    %83 = tpu.matmul %80, %81, %cst_38 {dimension_numbers = #tpu.dot_dimension_numbers<[1], [1], [0], [0], [0, 0, 1, 0], [], []>} : vector<8x128xbf16>, vector<8x128xbf16>, vector<8x8xf32> -> vector<8x8xf32>
    %cst_39 = arith.constant 0.353553385 : f32
    %84 = vector.broadcast %cst_39 : f32 to vector<8x8xf32>
    %85 = arith.mulf %83, %84 : vector<8x8xf32>
    %cst_40 = arith.constant -1.000000e+30 : f32
    %86 = vector.shape_cast %78 : vector<1x8xi1> to vector<1x8xi1>
    %87 = vector.broadcast %86 : vector<1x8xi1> to vector<8x8xi1>
    %88 = vector.broadcast %cst_40 : f32 to vector<8x8xf32>
    %89 = arith.select %87, %85, %88 : vector<8x8xi1>, vector<8x8xf32>
    %cst_41 = arith.constant dense<0xFF800000> : vector<8xf32>
    %90 = vector.multi_reduction <maximumf>, %89, %cst_41 [1] : vector<8x8xf32> to vector<8xf32>
    %91 = vector.shape_cast %90 : vector<8xf32> to vector<8x1xf32>
    %92 = vector.broadcast %91 : vector<8x1xf32> to vector<8x8xf32>
    %93 = arith.subf %89, %92 : vector<8x8xf32>
    %94 = math.exp %93 : vector<8x8xf32>
    %cst_42 = arith.constant dense<0.000000e+00> : vector<8xf32>
    %95 = vector.multi_reduction <add>, %94, %cst_42 [1] : vector<8x8xf32> to vector<8xf32>
    %96 = vector.shape_cast %95 : vector<8xf32> to vector<8x1xf32>
    %97 = tpu.reciprocal %96 {approx = true} : vector<8x1xf32> -> vector<8x1xf32>
    %98 = vector.broadcast %97 : vector<8x1xf32> to vector<8x8xf32>
    %99 = arith.mulf %94, %98 : vector<8x8xf32>
    %100 = arith.truncf %99 : vector<8x8xf32> to vector<8x8xbf16>
    %cst_43 = arith.constant dense<0.000000e+00> : vector<8x128xf32>
    %101 = tpu.matmul %100, %82, %cst_43 {dimension_numbers = #tpu.dot_dimension_numbers<[1], [0], [0], [1], [0, 0, 1, 1], [], []>} : vector<8x8xbf16>, vector<8x128xbf16>, vector<8x128xf32> -> vector<8x128xf32>
    %102 = arith.truncf %101 : vector<8x128xf32> to vector<8x128xbf16>
    %c0_44 = arith.constant 0 : index
    %c0_45 = arith.constant 0 : index
    %c0_46 = arith.constant 0 : index
    %103 = vector.load %arg11[%c0_44, %c0_45, %c0_46] : memref<4x128x128xbf16, #tpu.memory_space<vmem>>, vector<1x128x128xbf16>
    %104 = vector.shape_cast %103 : vector<1x128x128xbf16> to vector<128x128xbf16>
    %cst_47 = arith.constant dense<0.000000e+00> : vector<8x128xf32>
    %105 = tpu.matmul %102, %104, %cst_47 {dimension_numbers = #tpu.dot_dimension_numbers<[1], [0], [0], [1], [0, 0, 1, 1], [], []>} : vector<8x128xbf16>, vector<128x128xbf16>, vector<8x128xf32> -> vector<8x128xf32>
    %106 = arith.addf %79, %105 : vector<8x128xf32>
    %107 = vector.extract_strided_slice %66 {offsets = [0, 128], sizes = [8, 128], strides = [1, 1]} : vector<8x512xbf16> to vector<8x128xbf16>
    %108 = vector.extract_strided_slice %73 {offsets = [0, 128], sizes = [8, 128], strides = [1, 1]} : vector<8x512xbf16> to vector<8x128xbf16>
    %109 = vector.extract_strided_slice %74 {offsets = [0, 128], sizes = [8, 128], strides = [1, 1]} : vector<8x512xbf16> to vector<8x128xbf16>
    %cst_48 = arith.constant dense<0.000000e+00> : vector<8x8xf32>
    %110 = tpu.matmul %107, %108, %cst_48 {dimension_numbers = #tpu.dot_dimension_numbers<[1], [1], [0], [0], [0, 0, 1, 0], [], []>} : vector<8x128xbf16>, vector<8x128xbf16>, vector<8x8xf32> -> vector<8x8xf32>
    %cst_49 = arith.constant 0.353553385 : f32
    %111 = vector.broadcast %cst_49 : f32 to vector<8x8xf32>
    %112 = arith.mulf %110, %111 : vector<8x8xf32>
    %cst_50 = arith.constant -1.000000e+30 : f32
    %113 = vector.shape_cast %78 : vector<1x8xi1> to vector<1x8xi1>
    %114 = vector.broadcast %113 : vector<1x8xi1> to vector<8x8xi1>
    %115 = vector.broadcast %cst_50 : f32 to vector<8x8xf32>
    %116 = arith.select %114, %112, %115 : vector<8x8xi1>, vector<8x8xf32>
    %cst_51 = arith.constant dense<0xFF800000> : vector<8xf32>
    %117 = vector.multi_reduction <maximumf>, %116, %cst_51 [1] : vector<8x8xf32> to vector<8xf32>
    %118 = vector.shape_cast %117 : vector<8xf32> to vector<8x1xf32>
    %119 = vector.broadcast %118 : vector<8x1xf32> to vector<8x8xf32>
    %120 = arith.subf %116, %119 : vector<8x8xf32>
    %121 = math.exp %120 : vector<8x8xf32>
    %cst_52 = arith.constant dense<0.000000e+00> : vector<8xf32>
    %122 = vector.multi_reduction <add>, %121, %cst_52 [1] : vector<8x8xf32> to vector<8xf32>
    %123 = vector.shape_cast %122 : vector<8xf32> to vector<8x1xf32>
    %124 = tpu.reciprocal %123 {approx = true} : vector<8x1xf32> -> vector<8x1xf32>
    %125 = vector.broadcast %124 : vector<8x1xf32> to vector<8x8xf32>
    %126 = arith.mulf %121, %125 : vector<8x8xf32>
    %127 = arith.truncf %126 : vector<8x8xf32> to vector<8x8xbf16>
    %cst_53 = arith.constant dense<0.000000e+00> : vector<8x128xf32>
    %128 = tpu.matmul %127, %109, %cst_53 {dimension_numbers = #tpu.dot_dimension_numbers<[1], [0], [0], [1], [0, 0, 1, 1], [], []>} : vector<8x8xbf16>, vector<8x128xbf16>, vector<8x128xf32> -> vector<8x128xf32>
    %129 = arith.truncf %128 : vector<8x128xf32> to vector<8x128xbf16>
    %c1 = arith.constant 1 : index
    %c0_54 = arith.constant 0 : index
    %c0_55 = arith.constant 0 : index
    %130 = vector.load %arg11[%c1, %c0_54, %c0_55] : memref<4x128x128xbf16, #tpu.memory_space<vmem>>, vector<1x128x128xbf16>
    %131 = vector.shape_cast %130 : vector<1x128x128xbf16> to vector<128x128xbf16>
    %cst_56 = arith.constant dense<0.000000e+00> : vector<8x128xf32>
    %132 = tpu.matmul %129, %131, %cst_56 {dimension_numbers = #tpu.dot_dimension_numbers<[1], [0], [0], [1], [0, 0, 1, 1], [], []>} : vector<8x128xbf16>, vector<128x128xbf16>, vector<8x128xf32> -> vector<8x128xf32>
    %133 = arith.addf %106, %132 : vector<8x128xf32>
    %134 = vector.extract_strided_slice %66 {offsets = [0, 256], sizes = [8, 128], strides = [1, 1]} : vector<8x512xbf16> to vector<8x128xbf16>
    %135 = vector.extract_strided_slice %73 {offsets = [0, 256], sizes = [8, 128], strides = [1, 1]} : vector<8x512xbf16> to vector<8x128xbf16>
    %136 = vector.extract_strided_slice %74 {offsets = [0, 256], sizes = [8, 128], strides = [1, 1]} : vector<8x512xbf16> to vector<8x128xbf16>
    %cst_57 = arith.constant dense<0.000000e+00> : vector<8x8xf32>
    %137 = tpu.matmul %134, %135, %cst_57 {dimension_numbers = #tpu.dot_dimension_numbers<[1], [1], [0], [0], [0, 0, 1, 0], [], []>} : vector<8x128xbf16>, vector<8x128xbf16>, vector<8x8xf32> -> vector<8x8xf32>
    %cst_58 = arith.constant 0.353553385 : f32
    %138 = vector.broadcast %cst_58 : f32 to vector<8x8xf32>
    %139 = arith.mulf %137, %138 : vector<8x8xf32>
    %cst_59 = arith.constant -1.000000e+30 : f32
    %140 = vector.shape_cast %78 : vector<1x8xi1> to vector<1x8xi1>
    %141 = vector.broadcast %140 : vector<1x8xi1> to vector<8x8xi1>
    %142 = vector.broadcast %cst_59 : f32 to vector<8x8xf32>
    %143 = arith.select %141, %139, %142 : vector<8x8xi1>, vector<8x8xf32>
    %cst_60 = arith.constant dense<0xFF800000> : vector<8xf32>
    %144 = vector.multi_reduction <maximumf>, %143, %cst_60 [1] : vector<8x8xf32> to vector<8xf32>
    %145 = vector.shape_cast %144 : vector<8xf32> to vector<8x1xf32>
    %146 = vector.broadcast %145 : vector<8x1xf32> to vector<8x8xf32>
    %147 = arith.subf %143, %146 : vector<8x8xf32>
    %148 = math.exp %147 : vector<8x8xf32>
    %cst_61 = arith.constant dense<0.000000e+00> : vector<8xf32>
    %149 = vector.multi_reduction <add>, %148, %cst_61 [1] : vector<8x8xf32> to vector<8xf32>
    %150 = vector.shape_cast %149 : vector<8xf32> to vector<8x1xf32>
    %151 = tpu.reciprocal %150 {approx = true} : vector<8x1xf32> -> vector<8x1xf32>
    %152 = vector.broadcast %151 : vector<8x1xf32> to vector<8x8xf32>
    %153 = arith.mulf %148, %152 : vector<8x8xf32>
    %154 = arith.truncf %153 : vector<8x8xf32> to vector<8x8xbf16>
    %cst_62 = arith.constant dense<0.000000e+00> : vector<8x128xf32>
    %155 = tpu.matmul %154, %136, %cst_62 {dimension_numbers = #tpu.dot_dimension_numbers<[1], [0], [0], [1], [0, 0, 1, 1], [], []>} : vector<8x8xbf16>, vector<8x128xbf16>, vector<8x128xf32> -> vector<8x128xf32>
    %156 = arith.truncf %155 : vector<8x128xf32> to vector<8x128xbf16>
    %c2 = arith.constant 2 : index
    %c0_63 = arith.constant 0 : index
    %c0_64 = arith.constant 0 : index
    %157 = vector.load %arg11[%c2, %c0_63, %c0_64] : memref<4x128x128xbf16, #tpu.memory_space<vmem>>, vector<1x128x128xbf16>
    %158 = vector.shape_cast %157 : vector<1x128x128xbf16> to vector<128x128xbf16>
    %cst_65 = arith.constant dense<0.000000e+00> : vector<8x128xf32>
    %159 = tpu.matmul %156, %158, %cst_65 {dimension_numbers = #tpu.dot_dimension_numbers<[1], [0], [0], [1], [0, 0, 1, 1], [], []>} : vector<8x128xbf16>, vector<128x128xbf16>, vector<8x128xf32> -> vector<8x128xf32>
    %160 = arith.addf %133, %159 : vector<8x128xf32>
    %161 = vector.extract_strided_slice %66 {offsets = [0, 384], sizes = [8, 128], strides = [1, 1]} : vector<8x512xbf16> to vector<8x128xbf16>
    %162 = vector.extract_strided_slice %73 {offsets = [0, 384], sizes = [8, 128], strides = [1, 1]} : vector<8x512xbf16> to vector<8x128xbf16>
    %163 = vector.extract_strided_slice %74 {offsets = [0, 384], sizes = [8, 128], strides = [1, 1]} : vector<8x512xbf16> to vector<8x128xbf16>
    %cst_66 = arith.constant dense<0.000000e+00> : vector<8x8xf32>
    %164 = tpu.matmul %161, %162, %cst_66 {dimension_numbers = #tpu.dot_dimension_numbers<[1], [1], [0], [0], [0, 0, 1, 0], [], []>} : vector<8x128xbf16>, vector<8x128xbf16>, vector<8x8xf32> -> vector<8x8xf32>
    %cst_67 = arith.constant 0.353553385 : f32
    %165 = vector.broadcast %cst_67 : f32 to vector<8x8xf32>
    %166 = arith.mulf %164, %165 : vector<8x8xf32>
    %cst_68 = arith.constant -1.000000e+30 : f32
    %167 = vector.shape_cast %78 : vector<1x8xi1> to vector<1x8xi1>
    %168 = vector.broadcast %167 : vector<1x8xi1> to vector<8x8xi1>
    %169 = vector.broadcast %cst_68 : f32 to vector<8x8xf32>
    %170 = arith.select %168, %166, %169 : vector<8x8xi1>, vector<8x8xf32>
    %cst_69 = arith.constant dense<0xFF800000> : vector<8xf32>
    %171 = vector.multi_reduction <maximumf>, %170, %cst_69 [1] : vector<8x8xf32> to vector<8xf32>
    %172 = vector.shape_cast %171 : vector<8xf32> to vector<8x1xf32>
    %173 = vector.broadcast %172 : vector<8x1xf32> to vector<8x8xf32>
    %174 = arith.subf %170, %173 : vector<8x8xf32>
    %175 = math.exp %174 : vector<8x8xf32>
    %cst_70 = arith.constant dense<0.000000e+00> : vector<8xf32>
    %176 = vector.multi_reduction <add>, %175, %cst_70 [1] : vector<8x8xf32> to vector<8xf32>
    %177 = vector.shape_cast %176 : vector<8xf32> to vector<8x1xf32>
    %178 = tpu.reciprocal %177 {approx = true} : vector<8x1xf32> -> vector<8x1xf32>
    %179 = vector.broadcast %178 : vector<8x1xf32> to vector<8x8xf32>
    %180 = arith.mulf %175, %179 : vector<8x8xf32>
    %181 = arith.truncf %180 : vector<8x8xf32> to vector<8x8xbf16>
    %cst_71 = arith.constant dense<0.000000e+00> : vector<8x128xf32>
    %182 = tpu.matmul %181, %163, %cst_71 {dimension_numbers = #tpu.dot_dimension_numbers<[1], [0], [0], [1], [0, 0, 1, 1], [], []>} : vector<8x8xbf16>, vector<8x128xbf16>, vector<8x128xf32> -> vector<8x128xf32>
    %183 = arith.truncf %182 : vector<8x128xf32> to vector<8x128xbf16>
    %c3 = arith.constant 3 : index
    %c0_72 = arith.constant 0 : index
    %c0_73 = arith.constant 0 : index
    %184 = vector.load %arg11[%c3, %c0_72, %c0_73] : memref<4x128x128xbf16, #tpu.memory_space<vmem>>, vector<1x128x128xbf16>
    %185 = vector.shape_cast %184 : vector<1x128x128xbf16> to vector<128x128xbf16>
    %cst_74 = arith.constant dense<0.000000e+00> : vector<8x128xf32>
    %186 = tpu.matmul %183, %185, %cst_74 {dimension_numbers = #tpu.dot_dimension_numbers<[1], [0], [0], [1], [0, 0, 1, 1], [], []>} : vector<8x128xbf16>, vector<128x128xbf16>, vector<8x128xf32> -> vector<8x128xf32>
    %187 = arith.addf %160, %186 : vector<8x128xf32>
    %c0_75 = arith.constant 0 : index
    %c0_76 = arith.constant 0 : index
    %188 = vector.load %arg12[%c0_75, %c0_76] : memref<1x128xf32, #tpu.memory_space<vmem>>, vector<1x128xf32>
    %189 = vector.broadcast %188 : vector<1x128xf32> to vector<8x128xf32>
    %190 = arith.addf %187, %189 : vector<8x128xf32>
    %c0_77 = arith.constant 0 : index
    %c0_78 = arith.constant 0 : index
    %c0_79 = arith.constant 0 : index
    %191 = vector.load %arg13[%c0_77, %c0_78, %c0_79] : memref<1x8x128xf32, #tpu.memory_space<vmem>>, vector<1x8x128xf32>
    %192 = vector.shape_cast %191 : vector<1x8x128xf32> to vector<8x128xf32>
    %193 = vector.shape_cast %190 : vector<8x128xf32> to vector<1x8x128xf32>
    tpu.vector_store %arg13[%c0_77, %c0_78, %c0_79], %193 {strides = array<i32>} : memref<1x8x128xf32, #tpu.memory_space<vmem>>, vector<1x8x128xf32>,
    return
  }
  func.func @transform_0(%arg0: i32, %arg1: i32) -> (i32, i32, i32) {
    %c0_i32 = arith.constant 0 : i32
    %c0_i32_0 = arith.constant 0 : i32
    return %arg0, %arg1, %c0_i32 : i32, i32, i32
  }
  func.func @transform_1(%arg0: i32, %arg1: i32) -> (i32, i32, i32) {
    %c0_i32 = arith.constant 0 : i32
    %c0_i32_0 = arith.constant 0 : i32
    %c0_i32_1 = arith.constant 0 : i32
    return %arg0, %c0_i32, %c0_i32_0 : i32, i32, i32
  }
  func.func @transform_2(%arg0: i32, %arg1: i32) -> (i32, i32, i32) {
    %c0_i32 = arith.constant 0 : i32
    %c0_i32_0 = arith.constant 0 : i32
    %c0_i32_1 = arith.constant 0 : i32
    return %arg0, %c0_i32, %c0_i32_0 : i32, i32, i32
  }
  func.func @transform_3(%arg0: i32, %arg1: i32) -> (i32, i32) {
    %c0_i32 = arith.constant 0 : i32
    %c0_i32_0 = arith.constant 0 : i32
    %c0_i32_1 = arith.constant 0 : i32
    return %c0_i32, %c0_i32_0 : i32, i32
  }
  func.func @transform_4(%arg0: i32, %arg1: i32) -> (i32, i32) {
    %c0_i32 = arith.constant 0 : i32
    %c0_i32_0 = arith.constant 0 : i32
    %c0_i32_1 = arith.constant 0 : i32
    return %c0_i32, %c0_i32_0 : i32, i32
  }
  func.func @transform_5(%arg0: i32, %arg1: i32) -> (i32, i32) {
    %c0_i32 = arith.constant 0 : i32
    %c0_i32_0 = arith.constant 0 : i32
    %c0_i32_1 = arith.constant 0 : i32
    return %c0_i32, %c0_i32_0 : i32, i32
  }
  func.func @transform_6(%arg0: i32, %arg1: i32) -> (i32, i32) {
    %c0_i32 = arith.constant 0 : i32
    %c0_i32_0 = arith.constant 0 : i32
    %c0_i32_1 = arith.constant 0 : i32
    return %c0_i32, %c0_i32_0 : i32, i32
  }
  func.func @transform_7(%arg0: i32, %arg1: i32) -> (i32, i32) {
    %c0_i32 = arith.constant 0 : i32
    %c0_i32_0 = arith.constant 0 : i32
    %c0_i32_1 = arith.constant 0 : i32
    return %c0_i32, %c0_i32_0 : i32, i32
  }
  func.func @transform_8(%arg0: i32, %arg1: i32) -> (i32, i32) {
    %c0_i32 = arith.constant 0 : i32
    %c0_i32_0 = arith.constant 0 : i32
    %c0_i32_1 = arith.constant 0 : i32
    return %c0_i32, %c0_i32_0 : i32, i32
  }
  func.func @transform_9(%arg0: i32, %arg1: i32) -> (i32, i32, i32) {
    %c0_i32 = arith.constant 0 : i32
    %c0_i32_0 = arith.constant 0 : i32
    %c0_i32_1 = arith.constant 0 : i32
    %c0_i32_2 = arith.constant 0 : i32
    return %c0_i32, %c0_i32_0, %c0_i32_1 : i32, i32, i32
  }
  func.func @transform_10(%arg0: i32, %arg1: i32) -> (i32, i32) {
    %c0_i32 = arith.constant 0 : i32
    %c0_i32_0 = arith.constant 0 : i32
    %c0_i32_1 = arith.constant 0 : i32
    return %c0_i32, %c0_i32_0 : i32, i32
  }
  func.func @transform_11(%arg0: i32, %arg1: i32) -> (i32, i32, i32) {
    %c0_i32 = arith.constant 0 : i32
    %c0_i32_0 = arith.constant 0 : i32
    return %arg0, %arg1, %c0_i32 : i32, i32, i32
  }
}

</mosaic_0001>

<llo_original>
// kernel: tpu_custom_call.1
$region0: #{tpu_custom_call.1}
  #allocation0 [shape = 'u32[]', space=smem, size = 0x4, offset = 0x4, fixed_abs, tag = 'smem constant byte address 0x4 - core index']
  #allocation1 [shape = 'u32[144,128]{1,0:T(1,128)}', space=vmem, size = 0x12000, scoped, tag = 'internal scratch']
  %s0 = inlined_call_operand.hbm [shape: f32[2,8,128], index: 0, kind: input, shape index: {}]
  %s1 = inlined_call_operand.hbm [shape: f32[2,8,128], index: 1, kind: input, shape index: {}]
  %s2 = inlined_call_operand.vmem [shape: s32[2,1,8], index: 2, kind: input, shape index: {}]
  %s3 = inlined_call_operand.vmem [shape: f32[1,128], index: 3, kind: input, shape index: {}]
  %s4 = inlined_call_operand.hbm [shape: f32[1,128], index: 4, kind: input, shape index: {}]
  %s5 = inlined_call_operand.hbm [shape: bf16[128,512], index: 5, kind: input, shape index: {}]
  %s6 = inlined_call_operand.vmem [shape: f32[1,512], index: 6, kind: input, shape index: {}]
  %s7 = inlined_call_operand.hbm [shape: bf16[128,1024], index: 7, kind: input, shape index: {}]
  %s8 = inlined_call_operand.vmem [shape: f32[1,1024], index: 8, kind: input, shape index: {}]
  %s9 = inlined_call_operand.hbm [shape: bf16[4,128,128], index: 9, kind: input, shape index: {}]
  %s10 = inlined_call_operand.vmem [shape: f32[1,128], index: 10, kind: input, shape index: {}]
  %s11 = inlined_call_operand.hbm [shape: f32[2,8,128], index: 11, kind: output, shape index: {}]
  %s12 = sld [smem:[#allocation0]]
  $region101: #{tpu_custom_call.1} parent=0
    _
  %s14 = ssub.s32 1, %s12
  %s15 = scalar_select 0, %s14, %s12
  $region1: #{tpu_custom_call.1} parent=0
    #allocation2 [shape = 'u8[8192]{0}', space=vmem, size = 0x2000, scoped, tag = 'input window, operand 0']
    #allocation3 [shape = 's32[2]{0}', space=sflag, size = 0x8, scoped, tag = 'scoped memory for tpu_custom_call.1']
    #allocation4 [shape = 's32[2]{0}', space=sflag, size = 0x8, scoped, tag = 'scoped memory for tpu_custom_call.1']
    #allocation5 [shape = 'u8[8192]{0}', space=vmem, size = 0x2000, scoped, tag = 'input window, operand 1']
    #allocation6 [shape = 's32[2]{0}', space=sflag, size = 0x8, scoped, tag = 'scoped memory for tpu_custom_call.1']
    #allocation7 [shape = 'u8[512]{0}', space=vmem, size = 0x400, scoped, tag = 'input window, operand 4, single buffered']
    #allocation8 [shape = 'u8[131072]{0}', space=vmem, size = 0x20000, scoped, tag = 'input window, operand 5, single buffered']
    #allocation9 [shape = 's32[1]{0}', space=sflag, size = 0x4, scoped, tag = 'scoped memory for tpu_custom_call.1']
    #allocation10 [shape = 'u8[262144]{0}', space=vmem, size = 0x40000, scoped, tag = 'input window, operand 7, single buffered']
    #allocation11 [shape = 'u8[131072]{0}', space=vmem, size = 0x20000, scoped, tag = 'input window, operand 9, single buffered']
    #allocation12 [shape = 's32[1]{0}', space=sflag, size = 0x4, scoped, tag = 'scoped memory for tpu_custom_call.1']
    #allocation13 [shape = 'u8[8192]{0}', space=vmem, size = 0x2000, scoped, tag = 'output window, operand 0']
    %16 = vsyncpa [#allocation3], 0
    %s17 = scalar_lea.sflag [#allocation3], 1
    %18 = vsyncpa %s17, 0
    %19 = vsyncpa [#allocation6], 0
    %s20 = scalar_lea.sflag [#allocation6], 1
    %21 = vsyncpa %s20, 0
    %22 = vsyncpa [#allocation9], 0
    %23 = vsyncpa [#allocation12], 0
    %24 = vsyncpa [#allocation4], 0
    %s25 = scalar_lea.sflag [#allocation4], 1
    %26 = vsyncpa %s25, 0
    loop: start=0, step=1, limit=4
    $region2: #{tpu_custom_call.1} parent=1 // loop_pre_header
      _
    $region3: #{tpu_custom_call.1} parent=1 // loop_header
      %s28 = sphi 0, %s32
      %p29 = scmp.ge.s32.totalorder %s28, 4
      %s35 = sphi 0, %s47
      %s36 = sphi 0, %s43
      %s37 = sphi 0, %s35
      %s38 = sphi 0, %s36
      %s39 = sphi 0, %s37
      %s40 = sphi 0, %s38
      %s52 = sphi 0, %s54
      %s55 = sphi 0, %s52
      %s56 = sphi 0, %s55
      %s72 = sphi 0, %s56
      %s78 = sphi 0, %s80
      %s81 = sphi 0, %s78
      %s82 = sphi 0, %s81
      %s98 = sphi 0, %s82
      %s104 = sphi 0, %s106
      %s107 = sphi 0, %s104
      %s108 = sphi 0, %s107
      %s124 = sphi 0, %s108
      %s128 = sphi 0, %s128
      %s130 = sphi 0, %s128
      %s131 = sphi 0, %s130
      %s145 = sphi 0, %s131
      %s149 = sphi 0, %s149
      %s151 = sphi 0, %s149
      %s152 = sphi 0, %s151
      %s166 = sphi 0, %s152
      %s170 = sphi 0, %s170
      %s172 = sphi 0, %s170
      %s173 = sphi 0, %s172
      %s187 = sphi 0, %s173
      %s191 = sphi 0, %s191
      %s193 = sphi 0, %s191
      %s194 = sphi 0, %s193
      %s208 = sphi 0, %s194
      %s212 = sphi 0, %s212
      %s214 = sphi 0, %s212
      %s215 = sphi 0, %s214
      %s229 = sphi 0, %s215
      %s233 = sphi 0, %s233
      %s235 = sphi 0, %s233
      %s236 = sphi 0, %s235
      %s250 = sphi 0, %s236
      %s254 = sphi 0, %s254
      %s256 = sphi 0, %s254
      %s257 = sphi 0, %s256
      %s271 = sphi 0, %s257
      %s275 = sphi 0, %s275
      %s277 = sphi 0, %s275
      %s278 = sphi 0, %s277
      %s292 = sphi 0, %s278
      %s300 = sphi 0, %s302
      %s303 = sphi 0, %s300
      %s304 = sphi 0, %s303
      %s320 = sphi 0, %s304
    $region4: #{tpu_custom_call.1} parent=1 // loop_header_branch
      %31 = sbr.rel (%p29) target = $region8
    $region5: #{tpu_custom_call.1} parent=1 // loop_body
      %s33 = ssub.s32 %s28, 1
      %s34 = ssub.s32 %s28, 2
      %s41 = sadd.s32 1, %s36
      %p42 = scmp.ge.s32.totalorder %s41, 1
      %s43 = scalar_select %p42, 0, %s41
      %s44 = sadd.s32 1, %s35
      %s45 = scalar_select %p42, %s44, %s35
      %p46 = scmp.ge.s32.totalorder %s45, 2
      %s47 = scalar_select %p46, 0, %s45
      %s48 = ssub.s32 %s35, %s47
      %s49 = ssub.s32 %s36, %s43
      %s50 = sor.u32 %s48, %s49
      %p51 = scmp.eq.s32.totalorder %s50, 0
      %s53 = sadd.s32 %s52, 1
      %s54 = scalar_select %p51, %s52, %s53
      %p57 = pneg %p51
      %p58 = scmp.eq.s32.totalorder %s28, 1
      %p59 = por %p57, %p58
      %p60 = scmp.ne.s32.totalorder %s52, %s55
      %p61 = scmp.eq.s32.totalorder %s28, 0
      %p62 = por %p60, %p61
      %p63 = scmp.ne.s32.totalorder %s52, %s55
      %p64 = scmp.eq.s32.totalorder %s33, 1
      %p65 = por %p63, %p64
      %p66 = scmp.ne.s32.totalorder %s55, %s56
      %p67 = scmp.eq.s32.totalorder %s33, 0
      %p68 = por %p66, %p67
      %p69 = scmp.ne.s32.totalorder %s55, %s56
      %p70 = scmp.eq.s32.totalorder %s34, 1
      %p71 = por %p69, %p70
      %p73 = scmp.ne.s32.totalorder %s56, %s72
      %p74 = scmp.eq.s32.totalorder %s34, 0
      %p75 = por %p73, %p74
      %s76 = ssub.s32 %s35, %s47
      %p77 = scmp.eq.s32.totalorder %s76, 0
      %s79 = sadd.s32 %s78, 1
      %s80 = scalar_select %p77, %s78, %s79
      %p83 = pneg %p77
      %p84 = scmp.eq.s32.totalorder %s28, 1
      %p85 = por %p83, %p84
      %p86 = scmp.ne.s32.totalorder %s78, %s81
      %p87 = scmp.eq.s32.totalorder %s28, 0
      %p88 = por %p86, %p87
      %p89 = scmp.ne.s32.totalorder %s78, %s81
      %p90 = scmp.eq.s32.totalorder %s33, 1
      %p91 = por %p89, %p90
      %p92 = scmp.ne.s32.totalorder %s81, %s82
      %p93 = scmp.eq.s32.totalorder %s33, 0
      %p94 = por %p92, %p93
      %p95 = scmp.ne.s32.totalorder %s81, %s82
      %p96 = scmp.eq.s32.totalorder %s34, 1
      %p97 = por %p95, %p96
      %p99 = scmp.ne.s32.totalorder %s82, %s98
      %p100 = scmp.eq.s32.totalorder %s34, 0
      %p101 = por %p99, %p100
      %s102 = ssub.s32 %s35, %s47
      %p103 = scmp.eq.s32.totalorder %s102, 0
      %s105 = sadd.s32 %s104, 1
      %s106 = scalar_select %p103, %s104, %s105
      %p109 = pneg %p103
      %p110 = scmp.eq.s32.totalorder %s28, 1
      %p111 = por %p109, %p110
      %p112 = scmp.ne.s32.totalorder %s104, %s107
      %p113 = scmp.eq.s32.totalorder %s28, 0
      %p114 = por %p112, %p113
      %p115 = scmp.ne.s32.totalorder %s104, %s107
      %p116 = scmp.eq.s32.totalorder %s33, 1
      %p117 = por %p115, %p116
      %p118 = scmp.ne.s32.totalorder %s107, %s108
      %p119 = scmp.eq.s32.totalorder %s33, 0
      %p120 = por %p118, %p119
      %p121 = scmp.ne.s32.totalorder %s107, %s108
      %p122 = scmp.eq.s32.totalorder %s34, 1
      %p123 = por %p121, %p122
      %p125 = scmp.ne.s32.totalorder %s108, %s124
      %p126 = scmp.eq.s32.totalorder %s34, 0
      %p127 = por %p125, %p126
      %s129 = sadd.s32 %s128, 1
      %p132 = scmp.eq.s32.totalorder %s28, 1
      %p133 = scmp.ne.s32.totalorder %s128, %s130
      %p134 = scmp.eq.s32.totalorder %s28, 0
      %p135 = por %p133, %p134
      %p136 = scmp.ne.s32.totalorder %s128, %s130
      %p137 = scmp.eq.s32.totalorder %s33, 1
      %p138 = por %p136, %p137
      %p139 = scmp.ne.s32.totalorder %s130, %s131
      %p140 = scmp.eq.s32.totalorder %s33, 0
      %p141 = por %p139, %p140
      %p142 = scmp.ne.s32.totalorder %s130, %s131
      %p143 = scmp.eq.s32.totalorder %s34, 1
      %p144 = por %p142, %p143
      %p146 = scmp.ne.s32.totalorder %s131, %s145
      %p147 = scmp.eq.s32.totalorder %s34, 0
      %p148 = por %p146, %p147
      %s150 = sadd.s32 %s149, 1
      %p153 = scmp.eq.s32.totalorder %s28, 1
      %p154 = scmp.ne.s32.totalorder %s149, %s151
      %p155 = scmp.eq.s32.totalorder %s28, 0
      %p156 = por %p154, %p155
      %p157 = scmp.ne.s32.totalorder %s149, %s151
      %p158 = scmp.eq.s32.totalorder %s33, 1
      %p159 = por %p157, %p158
      %p160 = scmp.ne.s32.totalorder %s151, %s152
      %p161 = scmp.eq.s32.totalorder %s33, 0
      %p162 = por %p160, %p161
      %p163 = scmp.ne.s32.totalorder %s151, %s152
      %p164 = scmp.eq.s32.totalorder %s34, 1
      %p165 = por %p163, %p164
      %p167 = scmp.ne.s32.totalorder %s152, %s166
      %p168 = scmp.eq.s32.totalorder %s34, 0
      %p169 = por %p167, %p168
      %s171 = sadd.s32 %s170, 1
      %p174 = scmp.eq.s32.totalorder %s28, 1
      %p175 = scmp.ne.s32.totalorder %s170, %s172
      %p176 = scmp.eq.s32.totalorder %s28, 0
      %p177 = por %p175, %p176
      %p178 = scmp.ne.s32.totalorder %s170, %s172
      %p179 = scmp.eq.s32.totalorder %s33, 1
      %p180 = por %p178, %p179
      %p181 = scmp.ne.s32.totalorder %s172, %s173
      %p182 = scmp.eq.s32.totalorder %s33, 0
      %p183 = por %p181, %p182
      %p184 = scmp.ne.s32.totalorder %s172, %s173
      %p185 = scmp.eq.s32.totalorder %s34, 1
      %p186 = por %p184, %p185
      %p188 = scmp.ne.s32.totalorder %s173, %s187
      %p189 = scmp.eq.s32.totalorder %s34, 0
      %p190 = por %p188, %p189
      %s192 = sadd.s32 %s191, 1
      %p195 = scmp.eq.s32.totalorder %s28, 1
      %p196 = scmp.ne.s32.totalorder %s191, %s193
      %p197 = scmp.eq.s32.totalorder %s28, 0
      %p198 = por %p196, %p197
      %p199 = scmp.ne.s32.totalorder %s191, %s193
      %p200 = scmp.eq.s32.totalorder %s33, 1
      %p201 = por %p199, %p200
      %p202 = scmp.ne.s32.totalorder %s193, %s194
      %p203 = scmp.eq.s32.totalorder %s33, 0
      %p204 = por %p202, %p203
      %p205 = scmp.ne.s32.totalorder %s193, %s194
      %p206 = scmp.eq.s32.totalorder %s34, 1
      %p207 = por %p205, %p206
      %p209 = scmp.ne.s32.totalorder %s194, %s208
      %p210 = scmp.eq.s32.totalorder %s34, 0
      %p211 = por %p209, %p210
      %s213 = sadd.s32 %s212, 1
      %p216 = scmp.eq.s32.totalorder %s28, 1
      %p217 = scmp.ne.s32.totalorder %s212, %s214
      %p218 = scmp.eq.s32.totalorder %s28, 0
      %p219 = por %p217, %p218
      %p220 = scmp.ne.s32.totalorder %s212, %s214
      %p221 = scmp.eq.s32.totalorder %s33, 1
      %p222 = por %p220, %p221
      %p223 = scmp.ne.s32.totalorder %s214, %s215
      %p224 = scmp.eq.s32.totalorder %s33, 0
      %p225 = por %p223, %p224
      %p226 = scmp.ne.s32.totalorder %s214, %s215
      %p227 = scmp.eq.s32.totalorder %s34, 1
      %p228 = por %p226, %p227
      %p230 = scmp.ne.s32.totalorder %s215, %s229
      %p231 = scmp.eq.s32.totalorder %s34, 0
      %p232 = por %p230, %p231
      %s234 = sadd.s32 %s233, 1
      %p237 = scmp.eq.s32.totalorder %s28, 1
      %p238 = scmp.ne.s32.totalorder %s233, %s235
      %p239 = scmp.eq.s32.totalorder %s28, 0
      %p240 = por %p238, %p239
      %p241 = scmp.ne.s32.totalorder %s233, %s235
      %p242 = scmp.eq.s32.totalorder %s33, 1
      %p243 = por %p241, %p242
      %p244 = scmp.ne.s32.totalorder %s235, %s236
      %p245 = scmp.eq.s32.totalorder %s33, 0
      %p246 = por %p244, %p245
      %p247 = scmp.ne.s32.totalorder %s235, %s236
      %p248 = scmp.eq.s32.totalorder %s34, 1
      %p249 = por %p247, %p248
      %p251 = scmp.ne.s32.totalorder %s236, %s250
      %p252 = scmp.eq.s32.totalorder %s34, 0
      %p253 = por %p251, %p252
      %s255 = sadd.s32 %s254, 1
      %p258 = scmp.eq.s32.totalorder %s28, 1
      %p259 = scmp.ne.s32.totalorder %s254, %s256
      %p260 = scmp.eq.s32.totalorder %s28, 0
      %p261 = por %p259, %p260
      %p262 = scmp.ne.s32.totalorder %s254, %s256
      %p263 = scmp.eq.s32.totalorder %s33, 1
      %p264 = por %p262, %p263
      %p265 = scmp.ne.s32.totalorder %s256, %s257
      %p266 = scmp.eq.s32.totalorder %s33, 0
      %p267 = por %p265, %p266
      %p268 = scmp.ne.s32.totalorder %s256, %s257
      %p269 = scmp.eq.s32.totalorder %s34, 1
      %p270 = por %p268, %p269
      %p272 = scmp.ne.s32.totalorder %s257, %s271
      %p273 = scmp.eq.s32.totalorder %s34, 0
      %p274 = por %p272, %p273
      %s276 = sadd.s32 %s275, 1
      %p279 = scmp.eq.s32.totalorder %s28, 1
      %p280 = scmp.ne.s32.totalorder %s275, %s277
      %p281 = scmp.eq.s32.totalorder %s28, 0
      %p282 = por %p280, %p281
      %p283 = scmp.ne.s32.totalorder %s275, %s277
      %p284 = scmp.eq.s32.totalorder %s33, 1
      %p285 = por %p283, %p284
      %p286 = scmp.ne.s32.totalorder %s277, %s278
      %p287 = scmp.eq.s32.totalorder %s33, 0
      %p288 = por %p286, %p287
      %p289 = scmp.ne.s32.totalorder %s277, %s278
      %p290 = scmp.eq.s32.totalorder %s34, 1
      %p291 = por %p289, %p290
      %p293 = scmp.ne.s32.totalorder %s278, %s292
      %p294 = scmp.eq.s32.totalorder %s34, 0
      %p295 = por %p293, %p294
      %s296 = ssub.s32 %s35, %s47
      %s297 = ssub.s32 %s36, %s43
      %s298 = sor.u32 %s296, %s297
      %p299 = scmp.eq.s32.totalorder %s298, 0
      %s301 = sadd.s32 %s300, 1
      %s302 = scalar_select %p299, %s300, %s301
      %p305 = pneg %p299
      %p306 = scmp.eq.s32.totalorder %s28, 1
      %p307 = por %p305, %p306
      %p308 = scmp.ne.s32.totalorder %s300, %s303
      %p309 = scmp.eq.s32.totalorder %s28, 0
      %p310 = por %p308, %p309
      %p311 = scmp.ne.s32.totalorder %s300, %s303
      %p312 = scmp.eq.s32.totalorder %s33, 1
      %p313 = por %p311, %p312
      %p314 = scmp.ne.s32.totalorder %s303, %s304
      %p315 = scmp.eq.s32.totalorder %s33, 0
      %p316 = por %p314, %p315
      %p317 = scmp.ne.s32.totalorder %s303, %s304
      %p318 = scmp.eq.s32.totalorder %s34, 1
      %p319 = por %p317, %p318
      %p321 = scmp.ne.s32.totalorder %s304, %s320
      %p322 = scmp.eq.s32.totalorder %s34, 0
      %p323 = por %p321, %p322
      %p324 = scmp.le.s32.totalorder 1, %s28
      %p325 = scmp.lt.s32.totalorder %s28, 3
      %p326 = pnand %p324, %p325
      %p327 = pneg %p326
      // Predicated region
      $region9: #{tpu_custom_call.1} parent=5 // pred_check
        _
      $region10: #{tpu_custom_call.1} parent=5 // pred_check_branch
        %329 = sbr.rel (%p326) target = $region12
      $region11: #{tpu_custom_call.1} parent=5 // pred_region
        %s330 = ssub.s32 %s28, 1
        // Predicated region
        $region13: #{tpu_custom_call.1} parent=11 // pred_check
          %p331 = pneg %p141
        $region14: #{tpu_custom_call.1} parent=11 // pred_check_branch
          %333 = sbr.rel (%p331) target = $region16
        $region15: #{tpu_custom_call.1} parent=11 // pred_region
          _
        $region16: #{tpu_custom_call.1} parent=11 // pred_fallthru
          _
        // Predicated region
        $region17: #{tpu_custom_call.1} parent=11 // pred_check
          %p334 = pneg %p162
        $region18: #{tpu_custom_call.1} parent=11 // pred_check_branch
          %336 = sbr.rel (%p334) target = $region20
        $region19: #{tpu_custom_call.1} parent=11 // pred_region
          %s338 = ssub.s32 16, 16
          %339 = vsyncadd [#allocation6], %s338
          %s341 = sshll.u32 [#allocation7], 4
          %s342 = int_to_ptr.vmem [resolvable:$true] %s341
          %344 = dma.hbm_to_vmem [thread:$0]  %s4, 16, %s342, [#allocation6]
        $region20: #{tpu_custom_call.1} parent=11 // pred_fallthru
          _
        // Predicated region
        $region21: #{tpu_custom_call.1} parent=11 // pred_check
          %p345 = pneg %p183
        $region22: #{tpu_custom_call.1} parent=11 // pred_check_branch
          %347 = sbr.rel (%p345) target = $region24
        $region23: #{tpu_custom_call.1} parent=11 // pred_region
          %s349 = ssub.s32 4096, 4096
          %350 = vsyncadd [#allocation9], %s349
          %s351 = sshll.u32 [#allocation8], 4
          %s352 = int_to_ptr.vmem [resolvable:$true] %s351
          %357 = dma.hbm_to_vmem [thread:$0]  %s5, 4096, %s352, [#allocation9], 256, 256, 16
        $region24: #{tpu_custom_call.1} parent=11 // pred_fallthru
          _
        // Predicated region
        $region25: #{tpu_custom_call.1} parent=11 // pred_check
          %p358 = pneg %p204
        $region26: #{tpu_custom_call.1} parent=11 // pred_check_branch
          %360 = sbr.rel (%p358) target = $region28
        $region27: #{tpu_custom_call.1} parent=11 // pred_region
          _
        $region28: #{tpu_custom_call.1} parent=11 // pred_fallthru
          _
        // Predicated region
        $region29: #{tpu_custom_call.1} parent=11 // pred_check
          %p361 = pneg %p225
        $region30: #{tpu_custom_call.1} parent=11 // pred_check_branch
          %363 = sbr.rel (%p361) target = $region32
        $region31: #{tpu_custom_call.1} parent=11 // pred_region
          %s365 = ssub.s32 8192, 8192
          %366 = vsyncadd [#allocation9], %s365
          %s367 = sshll.u32 [#allocation10], 4
          %s368 = int_to_ptr.vmem [resolvable:$true] %s367
          %373 = dma.hbm_to_vmem [thread:$0]  %s7, 8192, %s368, [#allocation9], 512, 512, 32
        $region32: #{tpu_custom_call.1} parent=11 // pred_fallthru
          _
        // Predicated region
        $region33: #{tpu_custom_call.1} parent=11 // pred_check
          %p374 = pneg %p246
        $region34: #{tpu_custom_call.1} parent=11 // pred_check_branch
          %376 = sbr.rel (%p374) target = $region36
        $region35: #{tpu_custom_call.1} parent=11 // pred_region
          _
        $region36: #{tpu_custom_call.1} parent=11 // pred_fallthru
          _
        // Predicated region
        $region37: #{tpu_custom_call.1} parent=11 // pred_check
          %p377 = pneg %p267
        $region38: #{tpu_custom_call.1} parent=11 // pred_check_branch
          %379 = sbr.rel (%p377) target = $region40
        $region39: #{tpu_custom_call.1} parent=11 // pred_region
          %s381 = ssub.s32 4096, 4096
          %382 = vsyncadd [#allocation12], %s381
          %s383 = sshll.u32 [#allocation11], 4
          %s384 = int_to_ptr.vmem [resolvable:$true] %s383
          %389 = dma.hbm_to_vmem [thread:$0]  %s9, 4096, %s384, [#allocation12], 64, 64, 4
        $region40: #{tpu_custom_call.1} parent=11 // pred_fallthru
          _
        // Predicated region
        $region41: #{tpu_custom_call.1} parent=11 // pred_check
          %p390 = pneg %p288
        $region42: #{tpu_custom_call.1} parent=11 // pred_check_branch
          %392 = sbr.rel (%p390) target = $region44
        $region43: #{tpu_custom_call.1} parent=11 // pred_region
          _
        $region44: #{tpu_custom_call.1} parent=11 // pred_fallthru
          _
      $region12: #{tpu_custom_call.1} parent=5 // pred_fallthru
        _
      %p393 = scmp.lt.s32.totalorder %s28, 2
      // Predicated region
      $region45: #{tpu_custom_call.1} parent=5 // pred_check
        %p394 = pneg %p393
      $region46: #{tpu_custom_call.1} parent=5 // pred_check_branch
        %396 = sbr.rel (%p394) target = $region48
      $region47: #{tpu_custom_call.1} parent=5 // pred_region
        // Predicated region
        $region49: #{tpu_custom_call.1} parent=47 // pred_check
          %p397 = pneg %p62
        $region50: #{tpu_custom_call.1} parent=47 // pred_check_branch
          %399 = sbr.rel (%p397) target = $region52
        $region51: #{tpu_custom_call.1} parent=47 // pred_region
          %s400 = sand.u32 %s52, 1
          %s401 = scalar_lea.sflag [#allocation3], %s400
          %s402 = sand.u32 %s52, 1
          %s403 = smul.addr %s402, 8
          %s404 = scalar_lea.vmem [#allocation2], %s403
          %s406 = ssub.s32 128, 128
          %407 = vsyncadd %s401, %s406
          %s408 = sadd.s32 %s36, %s35
          %s409 = smul.addr %s408, 128
          %s410 = scalar_lea.hbm %s0, %s409
          %s412 = sshll.u32 %s404, 4
          %s413 = int_to_ptr.vmem [resolvable:$true] %s412
          %415 = dma.hbm_to_vmem [thread:$0]  %s410, 128, %s413, %s401
        $region52: #{tpu_custom_call.1} parent=47 // pred_fallthru
          _
        // Predicated region
        $region53: #{tpu_custom_call.1} parent=47 // pred_check
          %p416 = pneg %p88
        $region54: #{tpu_custom_call.1} parent=47 // pred_check_branch
          %418 = sbr.rel (%p416) target = $region56
        $region55: #{tpu_custom_call.1} parent=47 // pred_region
          %s419 = sand.u32 %s28, 1
          %s420 = scalar_lea.sflag [#allocation6], %s419
          %s421 = sand.u32 %s78, 1
          %s422 = smul.addr %s421, 8
          %s423 = scalar_lea.vmem [#allocation5], %s422
          %s425 = ssub.s32 128, 128
          %426 = vsyncadd %s420, %s425
          %s427 = smul.addr %s35, 128
          %s428 = scalar_lea.hbm %s1, %s427
          %s430 = sshll.u32 %s423, 4
          %s431 = int_to_ptr.vmem [resolvable:$true] %s430
          %433 = dma.hbm_to_vmem [thread:$0]  %s428, 128, %s431, %s420
        $region56: #{tpu_custom_call.1} parent=47 // pred_fallthru
          _
        // Predicated region
        $region57: #{tpu_custom_call.1} parent=47 // pred_check
          %p434 = pneg %p114
        $region58: #{tpu_custom_call.1} parent=47 // pred_check_branch
          %436 = sbr.rel (%p434) target = $region60
        $region59: #{tpu_custom_call.1} parent=47 // pred_region
          %p437 = scmp.lt.s32.totalorder %s35, 1
          %s438 = scalar_select %p437, %s35, 1
          %s439 = scalar_lea.vmem %s2, %s438
        $region60: #{tpu_custom_call.1} parent=47 // pred_fallthru
          _
      $region48: #{tpu_custom_call.1} parent=5 // pred_fallthru
        _
      %p440 = scmp.le.s32.totalorder 1, %s28
      %p441 = scmp.lt.s32.totalorder %s28, 3
      %p442 = pnand %p440, %p441
      %p443 = pneg %p442
      // Predicated region
      $region61: #{tpu_custom_call.1} parent=5 // pred_check
        _
      $region62: #{tpu_custom_call.1} parent=5 // pred_check_branch
        %445 = sbr.rel (%p442) target = $region64
      $region63: #{tpu_custom_call.1} parent=5 // pred_region
        %s446 = ssub.s32 %s28, 1
        %s447 = sand.u32 %s55, 1
        %s448 = scalar_lea.sflag [#allocation3], %s447
        %s449 = sand.u32 %s55, 1
        %s450 = smul.addr %s449, 8
        %s451 = scalar_lea.vmem [#allocation2], %s450
        // Predicated region
        $region65: #{tpu_custom_call.1} parent=63 // pred_check
          %p452 = pneg %p68
        $region66: #{tpu_custom_call.1} parent=63 // pred_check_branch
          %454 = sbr.rel (%p452) target = $region68
        $region67: #{tpu_custom_call.1} parent=63 // pred_region
          %455 = dma.done %s448, 128
        $region68: #{tpu_custom_call.1} parent=63 // pred_fallthru
          _
        %s456 = sand.u32 %s33, 1
        %s457 = scalar_lea.sflag [#allocation6], %s456
        %s458 = sand.u32 %s81, 1
        %s459 = smul.addr %s458, 8
        %s460 = scalar_lea.vmem [#allocation5], %s459
        // Predicated region
        $region69: #{tpu_custom_call.1} parent=63 // pred_check
          %p461 = pneg %p94
        $region70: #{tpu_custom_call.1} parent=63 // pred_check_branch
          %463 = sbr.rel (%p461) target = $region72
        $region71: #{tpu_custom_call.1} parent=63 // pred_region
          %464 = dma.done %s457, 128
        $region72: #{tpu_custom_call.1} parent=63 // pred_fallthru
          _
        // Predicated region
        $region73: #{tpu_custom_call.1} parent=63 // pred_check
          %p465 = pneg %p162
        $region74: #{tpu_custom_call.1} parent=63 // pred_check_branch
          %467 = sbr.rel (%p465) target = $region76
        $region75: #{tpu_custom_call.1} parent=63 // pred_region
          %468 = dma.done [#allocation6], 16
        $region76: #{tpu_custom_call.1} parent=63 // pred_fallthru
          _
        // Predicated region
        $region77: #{tpu_custom_call.1} parent=63 // pred_check
          %p469 = pneg %p183
        $region78: #{tpu_custom_call.1} parent=63 // pred_check_branch
          %471 = sbr.rel (%p469) target = $region80
        $region79: #{tpu_custom_call.1} parent=63 // pred_region
          %472 = dma.done [#allocation9], 4096
        $region80: #{tpu_custom_call.1} parent=63 // pred_fallthru
          _
        // Predicated region
        $region81: #{tpu_custom_call.1} parent=63 // pred_check
          %p473 = pneg %p225
        $region82: #{tpu_custom_call.1} parent=63 // pred_check_branch
          %475 = sbr.rel (%p473) target = $region84
        $region83: #{tpu_custom_call.1} parent=63 // pred_region
          %476 = dma.done [#allocation9], 8192
        $region84: #{tpu_custom_call.1} parent=63 // pred_fallthru
          _
        // Predicated region
        $region85: #{tpu_custom_call.1} parent=63 // pred_check
          %p477 = pneg %p267
        $region86: #{tpu_custom_call.1} parent=63 // pred_check_branch
          %479 = sbr.rel (%p477) target = $region88
        $region87: #{tpu_custom_call.1} parent=63 // pred_region
          %480 = dma.done [#allocation12], 4096
        $region88: #{tpu_custom_call.1} parent=63 // pred_fallthru
          _
        %s481 = sand.u32 %s55, 1
        %s482 = scalar_lea.sflag [#allocation3], %s481
        %s483 = sand.u32 %s55, 1
        %s484 = smul.addr %s483, 8
        %s485 = scalar_lea.vmem [#allocation2], %s484
        %p486 = pneg %p68
        %p487 = pneg %p65
        %s488 = sand.u32 %s33, 1
        %s489 = scalar_lea.sflag [#allocation6], %s488
        %s490 = sand.u32 %s81, 1
        %s491 = smul.addr %s490, 8
        %s492 = scalar_lea.vmem [#allocation5], %s491
        %p493 = pneg %p94
        %p494 = pneg %p91
        %p495 = scmp.lt.s32.totalorder %s37, 1
        %s496 = scalar_select %p495, %s37, 1
        %s497 = scalar_lea.vmem %s2, %s496
        %p498 = pneg %p120
        %p499 = pneg %p117
        %p500 = pneg %p141
        %p501 = pneg %p138
        %p502 = pneg %p162
        %p503 = pneg %p159
        %p504 = pneg %p183
        %p505 = pneg %p180
        %p506 = pneg %p204
        %p507 = pneg %p201
        %p508 = pneg %p225
        %p509 = pneg %p222
        %p510 = pneg %p246
        %p511 = pneg %p243
        %p512 = pneg %p267
        %p513 = pneg %p264
        %p514 = pneg %p288
        %p515 = pneg %p285
        %p516 = pneg %p316
        %p517 = pneg %p313
        %s518 = sand.u32 %s303, 1
        %s519 = scalar_lea.sflag [#allocation4], %s518
        %s520 = sand.u32 %s303, 1
        %s521 = smul.addr %s520, 8
        %s522 = scalar_lea.vmem [#allocation13], %s521
        %p523 = scmp.lt.s32.totalorder %s37, 1
        %s524 = scalar_select %p523, %s37, 1
        %s525 = scalar_lea.vmem %s2, %s524
        %v527 = vlaneseq
        %v528 = vand.u32 %v527, 127
        %vm529 = vcmp.lt.s32.totalorder %v528, 32
        %v530 = vld [vmem:[%s451] sm:$0xff]
        %531 = vadd.xlane.f32.xlu0 %v530
        %v532 = vpop.xlane.xlu0 %531
        %v533 = vmul.f32 %v532, 0.03125
        %v534 = vsub.f32 %v530, %v533
        %v535 = vsel %vm529, 1, 0
        %vm536 = vcmp.eq.s32.totalorder %v535, 1
        %v537 = vsel %vm536, %v534, 0.0
        %v538 = vand.u32 2147483647, %v537
        %539 = vadd.xlane.f32.xlu0 %v538
        %v540 = vpop.xlane.xlu0 %539
        %v541 = vmul.f32 %v540, 0.03125
        %v542 = vadd.f32 %v541, 1e-05
        %v543 = vrcp.pop %v542
        %v544 = vmul.f32 %v537, %v543
        %v545 = vld [vmem:[%s3] sm:$0x1]
        %v547 = vlaneseq
        %v548 = vshrl.u32 %v547, 7
        %v549 = vsub.s32 0, %v548
        %v550 = vrot.slane %v545, %v549
        %v552 = vmul.f32 %v544, %v550
        %v553 = vld [vmem:[#allocation7] sm:$0x1]
        %v555 = vlaneseq
        %v556 = vshrl.u32 %v555, 7
        %v557 = vsub.s32 0, %v556
        %v558 = vrot.slane %v553, %v557
        %v560 = vadd.f32 %v552, %v558
        %v561 = vpack.c.bf16 %v560, %v560
        %v562 = vld [vmem:[%s460] sm:$0xff]
        %563 = vadd.xlane.f32.xlu0 %v562
        %v564 = vpop.xlane.xlu0 %563
        %v565 = vmul.f32 %v564, 0.03125
        %v566 = vsub.f32 %v562, %v565
        %v567 = vsel %vm536, %v566, 0.0
        %v568 = vand.u32 2147483647, %v567
        %569 = vadd.xlane.f32.xlu0 %v568
        %v570 = vpop.xlane.xlu0 %569
        %v571 = vmul.f32 %v570, 0.03125
        %v572 = vadd.f32 %v571, 1e-05
        %v573 = vrcp.pop %v572
        %v574 = vmul.f32 %v567, %v573
        %v575 = vmul.f32 %v574, %v550
        %v576 = vadd.f32 %v575, %v558
        %v577 = vpack.c.bf16 %v576, %v576
        %v578 = vld [vmem:[#allocation8] sm:$0xff]
        %v579 = vld [vmem:[#allocation8 + $0x8] sm:$0xff]
        %v580 = vld [vmem:[#allocation8 + $0x10] sm:$0xff]
        %v581 = vld [vmem:[#allocation8 + $0x18] sm:$0xff]
        %v582 = vld [vmem:[#allocation8 + $0x20] sm:$0xff]
        %v583 = vld [vmem:[#allocation8 + $0x28] sm:$0xff]
        %v584 = vld [vmem:[#allocation8 + $0x30] sm:$0xff]
        %v585 = vld [vmem:[#allocation8 + $0x38] sm:$0xff]
        %v586 = vld [vmem:[#allocation8 + $0x40] sm:$0xff]
        %v587 = vld [vmem:[#allocation8 + $0x48] sm:$0xff]
        %v588 = vld [vmem:[#allocation8 + $0x50] sm:$0xff]
        %v589 = vld [vmem:[#allocation8 + $0x58] sm:$0xff]
        %v590 = vld [vmem:[#allocation8 + $0x60] sm:$0xff]
        %v591 = vld [vmem:[#allocation8 + $0x68] sm:$0xff]
        %v592 = vld [vmem:[#allocation8 + $0x70] sm:$0xff]
        %v593 = vld [vmem:[#allocation8 + $0x78] sm:$0xff]
        %v594 = vld [vmem:[#allocation8 + $0x80] sm:$0xff]
        %v595 = vld [vmem:[#allocation8 + $0x88] sm:$0xff]
        %v596 = vld [vmem:[#allocation8 + $0x90] sm:$0xff]
        %v597 = vld [vmem:[#allocation8 + $0x98] sm:$0xff]
        %v598 = vld [vmem:[#allocation8 + $0xa0] sm:$0xff]
        %v599 = vld [vmem:[#allocation8 + $0xa8] sm:$0xff]
        %v600 = vld [vmem:[#allocation8 + $0xb0] sm:$0xff]
        %v601 = vld [vmem:[#allocation8 + $0xb8] sm:$0xff]
        %v602 = vld [vmem:[#allocation8 + $0xc0] sm:$0xff]
        %v603 = vld [vmem:[#allocation8 + $0xc8] sm:$0xff]
        %v604 = vld [vmem:[#allocation8 + $0xd0] sm:$0xff]
        %v605 = vld [vmem:[#allocation8 + $0xd8] sm:$0xff]
        %v606 = vld [vmem:[#allocation8 + $0xe0] sm:$0xff]
        %v607 = vld [vmem:[#allocation8 + $0xe8] sm:$0xff]
        %v608 = vld [vmem:[#allocation8 + $0xf0] sm:$0xff]
        %v609 = vld [vmem:[#allocation8 + $0xf8] sm:$0xff]
        %v610 = vld [vmem:[%s6] sm:$0xf]
        %v612 = vlaneseq
        %v613 = vshrl.u32 %v612, 7
        %v614 = vsub.s32 0, %v613
        %v615 = vrot.slane %v610, %v614
        %v616 = vlaneseq
        %v617 = vshrl.u32 %v616, 7
        %v618 = vsub.s32 1, %v617
        %v619 = vrot.slane %v610, %v618
        %v620 = vlaneseq
        %v621 = vshrl.u32 %v620, 7
        %v622 = vsub.s32 2, %v621
        %v623 = vrot.slane %v610, %v622
        %v624 = vlaneseq
        %v625 = vshrl.u32 %v624, 7
        %v626 = vsub.s32 3, %v625
        %v627 = vrot.slane %v610, %v626
        %v664 = vunpack.c.l.b16 %v578
        %v665 = vunpack.c.h.b16 %v578
        %v666 = vunpack.c.l.b16 %v579
        %v667 = vunpack.c.h.b16 %v579
        %v668 = vunpack.c.l.b16 %v580
        %v669 = vunpack.c.h.b16 %v580
        %v670 = vunpack.c.l.b16 %v581
        %v671 = vunpack.c.h.b16 %v581
        %v672 = vunpack.c.l.b16 %v582
        %v673 = vunpack.c.h.b16 %v582
        %v674 = vunpack.c.l.b16 %v583
        %v675 = vunpack.c.h.b16 %v583
        %v676 = vunpack.c.l.b16 %v584
        %v677 = vunpack.c.h.b16 %v584
        %v678 = vunpack.c.l.b16 %v585
        %v679 = vunpack.c.h.b16 %v585
        %v680 = vunpack.c.l.b16 %v586
        %v681 = vunpack.c.h.b16 %v586
        %v682 = vunpack.c.l.b16 %v587
        %v683 = vunpack.c.h.b16 %v587
        %v684 = vunpack.c.l.b16 %v588
        %v685 = vunpack.c.h.b16 %v588
        %v686 = vunpack.c.l.b16 %v589
        %v687 = vunpack.c.h.b16 %v589
        %v688 = vunpack.c.l.b16 %v590
        %v689 = vunpack.c.h.b16 %v590
        %v690 = vunpack.c.l.b16 %v591
        %v691 = vunpack.c.h.b16 %v591
        %v692 = vunpack.c.l.b16 %v592
        %v693 = vunpack.c.h.b16 %v592
        %v694 = vunpack.c.l.b16 %v593
        %v695 = vunpack.c.h.b16 %v593
        %v696 = vunpack.c.l.b16 %v594
        %v697 = vunpack.c.h.b16 %v594
        %v698 = vunpack.c.l.b16 %v595
        %v699 = vunpack.c.h.b16 %v595
        %v700 = vunpack.c.l.b16 %v596
        %v701 = vunpack.c.h.b16 %v596
        %v702 = vunpack.c.l.b16 %v597
        %v703 = vunpack.c.h.b16 %v597
        %v704 = vunpack.c.l.b16 %v598
        %v705 = vunpack.c.h.b16 %v598
        %v706 = vunpack.c.l.b16 %v599
        %v707 = vunpack.c.h.b16 %v599
        %v708 = vunpack.c.l.b16 %v600
        %v709 = vunpack.c.h.b16 %v600
        %v710 = vunpack.c.l.b16 %v601
        %v711 = vunpack.c.h.b16 %v601
        %v712 = vunpack.c.l.b16 %v602
        %v713 = vunpack.c.h.b16 %v602
        %v714 = vunpack.c.l.b16 %v603
        %v715 = vunpack.c.h.b16 %v603
        %v716 = vunpack.c.l.b16 %v604
        %v717 = vunpack.c.h.b16 %v604
        %v718 = vunpack.c.l.b16 %v605
        %v719 = vunpack.c.h.b16 %v605
        %v720 = vunpack.c.l.b16 %v606
        %v721 = vunpack.c.h.b16 %v606
        %v722 = vunpack.c.l.b16 %v607
        %v723 = vunpack.c.h.b16 %v607
        %v724 = vunpack.c.l.b16 %v608
        %v725 = vunpack.c.h.b16 %v608
        %v726 = vunpack.c.l.b16 %v609
        %v727 = vunpack.c.h.b16 %v609
        %v728 = vpack.c.b16 %v668, %v664
        %v729 = vpack.c.b16 %v669, %v665
        %v730 = vpack.c.b16 %v670, %v666
        %v731 = vpack.c.b16 %v671, %v667
        %v732 = vpack.c.b16 %v676, %v672
        %v733 = vpack.c.b16 %v677, %v673
        %v734 = vpack.c.b16 %v678, %v674
        %v735 = vpack.c.b16 %v679, %v675
        %v736 = vpack.c.b16 %v684, %v680
        %v737 = vpack.c.b16 %v685, %v681
        %v738 = vpack.c.b16 %v686, %v682
        %v739 = vpack.c.b16 %v687, %v683
        %v740 = vpack.c.b16 %v692, %v688
        %v741 = vpack.c.b16 %v693, %v689
        %v742 = vpack.c.b16 %v694, %v690
        %v743 = vpack.c.b16 %v695, %v691
        %v744 = vpack.c.b16 %v700, %v696
        %v745 = vpack.c.b16 %v701, %v697
        %v746 = vpack.c.b16 %v702, %v698
        %v747 = vpack.c.b16 %v703, %v699
        %v748 = vpack.c.b16 %v708, %v704
        %v749 = vpack.c.b16 %v709, %v705
        %v750 = vpack.c.b16 %v710, %v706
        %v751 = vpack.c.b16 %v711, %v707
        %v752 = vpack.c.b16 %v716, %v712
        %v753 = vpack.c.b16 %v717, %v713
        %v754 = vpack.c.b16 %v718, %v714
        %v755 = vpack.c.b16 %v719, %v715
        %v756 = vpack.c.b16 %v724, %v720
        %v757 = vpack.c.b16 %v725, %v721
        %v758 = vpack.c.b16 %v726, %v722
        %v759 = vpack.c.b16 %v727, %v723
        %792 = vmatprep.subr.bf16.mxu0 %v729
        %793 = vmatpush1.bf16.msra.mxu0 %v728
        %794 = vmatprep.subr.bf16.mxu0 %v733
        %795 = vmatpush1.bf16.msra.mxu0 %v732
        %796 = vmatprep.subr.bf16.mxu0 %v737
        %797 = vmatpush1.bf16.msra.mxu0 %v736
        %798 = vmatprep.subr.bf16.mxu0 %v741
        %799 = vmatpush1.bf16.msra.mxu0 %v740
        %800 = vmatprep.subr.bf16.mxu0 %v745
        %801 = vmatpush1.bf16.msra.mxu0 %v744
        %802 = vmatprep.subr.bf16.mxu0 %v749
        %803 = vmatpush1.bf16.msra.mxu0 %v748
        %804 = vmatprep.subr.bf16.mxu0 %v753
        %805 = vmatpush1.bf16.msra.mxu0 %v752
        %806 = vmatprep.subr.bf16.mxu0 %v757
        %807 = vmatpush1.bf16.msra.mxu0 %v756
        %808 = vmatprep.subr.bf16.mxu0 0
        %809 = vmatpush1.bf16.msra.mxu0 0
        %810 = vmatprep.subr.bf16.mxu0 0
        %811 = vmatpush1.bf16.msra.mxu0 0
        %812 = vmatprep.subr.bf16.mxu0 0
        %813 = vmatpush1.bf16.msra.mxu0 0
        %814 = vmatprep.subr.bf16.mxu0 0
        %815 = vmatpush1.bf16.msra.mxu0 0
        %816 = vmatprep.subr.bf16.mxu0 0
        %817 = vmatpush1.bf16.msra.mxu0 0
        %818 = vmatprep.subr.bf16.mxu0 0
        %819 = vmatpush1.bf16.msra.mxu0 0
        %820 = vmatprep.subr.bf16.mxu0 0
        %821 = vmatpush1.bf16.msra.mxu0 0
        %822 = vmatprep.subr.bf16.mxu0 0
        %823 = vmatpush1.bf16.msra.mxu0 0
        %824 = vmatprep.mubr.bf16.mxu0 0
        %825 = vmatmul.mubr.bf16.gmra.mrb[0].mxu0 %v561
        %v826 = vpop.f32.mrb[0].mxu0
        %v827 = vadd.f32 %v615, %v826
        %v828 = vpop.f32.mrb[0].mxu0
        %v829 = vadd.f32 %v619, %v828
        %v830 = vpop.f32.mrb[0].mxu0
        %v831 = vpop.f32.mrb[0].mxu0
        %832 = vdwg.mxu0
        %833 = vmatprep.subr.bf16.mxu0 %v731
        %834 = vmatpush1.bf16.msra.mxu0 %v730
        %835 = vmatprep.subr.bf16.mxu0 %v735
        %836 = vmatpush1.bf16.msra.mxu0 %v734
        %837 = vmatprep.subr.bf16.mxu0 %v739
        %838 = vmatpush1.bf16.msra.mxu0 %v738
        %839 = vmatprep.subr.bf16.mxu0 %v743
        %840 = vmatpush1.bf16.msra.mxu0 %v742
        %841 = vmatprep.subr.bf16.mxu0 %v747
        %842 = vmatpush1.bf16.msra.mxu0 %v746
        %843 = vmatprep.subr.bf16.mxu0 %v751
        %844 = vmatpush1.bf16.msra.mxu0 %v750
        %845 = vmatprep.subr.bf16.mxu0 %v755
        %846 = vmatpush1.bf16.msra.mxu0 %v754
        %847 = vmatprep.subr.bf16.mxu0 %v759
        %848 = vmatpush1.bf16.msra.mxu0 %v758
        %849 = vmatprep.subr.bf16.mxu0 0
        %850 = vmatpush1.bf16.msra.mxu0 0
        %851 = vmatprep.subr.bf16.mxu0 0
        %852 = vmatpush1.bf16.msra.mxu0 0
        %853 = vmatprep.subr.bf16.mxu0 0
        %854 = vmatpush1.bf16.msra.mxu0 0
        %855 = vmatprep.subr.bf16.mxu0 0
        %856 = vmatpush1.bf16.msra.mxu0 0
        %857 = vmatprep.subr.bf16.mxu0 0
        %858 = vmatpush1.bf16.msra.mxu0 0
        %859 = vmatprep.subr.bf16.mxu0 0
        %860 = vmatpush1.bf16.msra.mxu0 0
        %861 = vmatprep.subr.bf16.mxu0 0
        %862 = vmatpush1.bf16.msra.mxu0 0
        %863 = vmatprep.subr.bf16.mxu0 0
        %864 = vmatpush1.bf16.msra.mxu0 0
        %865 = vmatprep.mubr.bf16.mxu0 0
        %866 = vmatmul.mubr.bf16.gmra.mrb[0].mxu0 %v561
        %v867 = vpop.f32.mrb[0].mxu0
        %v868 = vadd.f32 %v623, %v867
        %v869 = vpop.f32.mrb[0].mxu0
        %v870 = vadd.f32 %v627, %v869
        %v871 = vpop.f32.mrb[0].mxu0
        %v872 = vpop.f32.mrb[0].mxu0
        %873 = vdwg.mxu0
        %v874 = vpack.c.bf16 %v827, %v827
        %v875 = vpack.c.bf16 %v829, %v829
        %v876 = vpack.c.bf16 %v868, %v868
        %v877 = vpack.c.bf16 %v870, %v870
        %v878 = vld [vmem:[#allocation10] sm:$0xff]
        %v879 = vld [vmem:[#allocation10 + $0x8] sm:$0xff]
        %v880 = vld [vmem:[#allocation10 + $0x10] sm:$0xff]
        %v881 = vld [vmem:[#allocation10 + $0x18] sm:$0xff]
        %v882 = vld [vmem:[#allocation10 + $0x20] sm:$0xff]
        %v883 = vld [vmem:[#allocation10 + $0x28] sm:$0xff]
        %v884 = vld [vmem:[#allocation10 + $0x30] sm:$0xff]
        %v885 = vld [vmem:[#allocation10 + $0x38] sm:$0xff]
        %v886 = vld [vmem:[#allocation10 + $0x40] sm:$0xff]
        %v887 = vld [vmem:[#allocation10 + $0x48] sm:$0xff]
        %v888 = vld [vmem:[#allocation10 + $0x50] sm:$0xff]
        %v889 = vld [vmem:[#allocation10 + $0x58] sm:$0xff]
        %v890 = vld [vmem:[#allocation10 + $0x60] sm:$0xff]
        %v891 = vld [vmem:[#allocation10 + $0x68] sm:$0xff]
        %v892 = vld [vmem:[#allocation10 + $0x70] sm:$0xff]
        %v893 = vld [vmem:[#allocation10 + $0x78] sm:$0xff]
        %v894 = vld [vmem:[#allocation10 + $0x80] sm:$0xff]
        %v895 = vld [vmem:[#allocation10 + $0x88] sm:$0xff]
        %v896 = vld [vmem:[#allocation10 + $0x90] sm:$0xff]
        %v897 = vld [vmem:[#allocation10 + $0x98] sm:$0xff]
        %v898 = vld [vmem:[#allocation10 + $0xa0] sm:$0xff]
        %v899 = vld [vmem:[#allocation10 + $0xa8] sm:$0xff]
        %v900 = vld [vmem:[#allocation10 + $0xb0] sm:$0xff]
        %v901 = vld [vmem:[#allocation10 + $0xb8] sm:$0xff]
        %v902 = vld [vmem:[#allocation10 + $0xc0] sm:$0xff]
        %v903 = vld [vmem:[#allocation10 + $0xc8] sm:$0xff]
        %v904 = vld [vmem:[#allocation10 + $0xd0] sm:$0xff]
        %v905 = vld [vmem:[#allocation10 + $0xd8] sm:$0xff]
        %v906 = vld [vmem:[#allocation10 + $0xe0] sm:$0xff]
        %v907 = vld [vmem:[#allocation10 + $0xe8] sm:$0xff]
        %v908 = vld [vmem:[#allocation10 + $0xf0] sm:$0xff]
        %v909 = vld [vmem:[#allocation10 + $0xf8] sm:$0xff]
        %v910 = vld [vmem:[#allocation10 + $0x100] sm:$0xff]
        %v911 = vld [vmem:[#allocation10 + $0x108] sm:$0xff]
        %v912 = vld [vmem:[#allocation10 + $0x110] sm:$0xff]
        %v913 = vld [vmem:[#allocation10 + $0x118] sm:$0xff]
        %v914 = vld [vmem:[#allocation10 + $0x120] sm:$0xff]
        %v915 = vld [vmem:[#allocation10 + $0x128] sm:$0xff]
        %v916 = vld [vmem:[#allocation10 + $0x130] sm:$0xff]
        %v917 = vld [vmem:[#allocation10 + $0x138] sm:$0xff]
        %v918 = vld [vmem:[#allocation10 + $0x140] sm:$0xff]
        %v919 = vld [vmem:[#allocation10 + $0x148] sm:$0xff]
        %v920 = vld [vmem:[#allocation10 + $0x150] sm:$0xff]
        %v921 = vld [vmem:[#allocation10 + $0x158] sm:$0xff]
        %v922 = vld [vmem:[#allocation10 + $0x160] sm:$0xff]
        %v923 = vld [vmem:[#allocation10 + $0x168] sm:$0xff]
        %v924 = vld [vmem:[#allocation10 + $0x170] sm:$0xff]
        %v925 = vld [vmem:[#allocation10 + $0x178] sm:$0xff]
        %v926 = vld [vmem:[#allocation10 + $0x180] sm:$0xff]
        %v927 = vld [vmem:[#allocation10 + $0x188] sm:$0xff]
        %v928 = vld [vmem:[#allocation10 + $0x190] sm:$0xff]
        %v929 = vld [vmem:[#allocation10 + $0x198] sm:$0xff]
        %v930 = vld [vmem:[#allocation10 + $0x1a0] sm:$0xff]
        %v931 = vld [vmem:[#allocation10 + $0x1a8] sm:$0xff]
        %v932 = vld [vmem:[#allocation10 + $0x1b0] sm:$0xff]
        %v933 = vld [vmem:[#allocation10 + $0x1b8] sm:$0xff]
        %v934 = vld [vmem:[#allocation10 + $0x1c0] sm:$0xff]
        %v935 = vld [vmem:[#allocation10 + $0x1c8] sm:$0xff]
        %v936 = vld [vmem:[#allocation10 + $0x1d0] sm:$0xff]
        %v937 = vld [vmem:[#allocation10 + $0x1d8] sm:$0xff]
        %v938 = vld [vmem:[#allocation10 + $0x1e0] sm:$0xff]
        %v939 = vld [vmem:[#allocation10 + $0x1e8] sm:$0xff]
        %v940 = vld [vmem:[#allocation10 + $0x1f0] sm:$0xff]
        %v941 = vld [vmem:[#allocation10 + $0x1f8] sm:$0xff]
        %v942 = vld [vmem:[%s8] sm:$0xff]
        %v944 = vlaneseq
        %v945 = vshrl.u32 %v944, 7
        %v946 = vsub.s32 0, %v945
        %v947 = vrot.slane %v942, %v946
        %v948 = vlaneseq
        %v949 = vshrl.u32 %v948, 7
        %v950 = vsub.s32 1, %v949
        %v951 = vrot.slane %v942, %v950
        %v952 = vlaneseq
        %v953 = vshrl.u32 %v952, 7
        %v954 = vsub.s32 2, %v953
        %v955 = vrot.slane %v942, %v954
        %v956 = vlaneseq
        %v957 = vshrl.u32 %v956, 7
        %v958 = vsub.s32 3, %v957
        %v959 = vrot.slane %v942, %v958
        %v960 = vlaneseq
        %v961 = vshrl.u32 %v960, 7
        %v962 = vsub.s32 4, %v961
        %v963 = vrot.slane %v942, %v962
        %v964 = vlaneseq
        %v965 = vshrl.u32 %v964, 7
        %v966 = vsub.s32 5, %v965
        %v967 = vrot.slane %v942, %v966
        %v968 = vlaneseq
        %v969 = vshrl.u32 %v968, 7
        %v970 = vsub.s32 6, %v969
        %v971 = vrot.slane %v942, %v970
        %v972 = vlaneseq
        %v973 = vshrl.u32 %v972, 7
        %v974 = vsub.s32 7, %v973
        %v975 = vrot.slane %v942, %v974
        %v1048 = vunpack.c.l.b16 %v878
        %v1049 = vunpack.c.h.b16 %v878
        %v1050 = vunpack.c.l.b16 %v879
        %v1051 = vunpack.c.h.b16 %v879
        %v1052 = vunpack.c.l.b16 %v880
        %v1053 = vunpack.c.h.b16 %v880
        %v1054 = vunpack.c.l.b16 %v881
        %v1055 = vunpack.c.h.b16 %v881
        %v1056 = vunpack.c.l.b16 %v882
        %v1057 = vunpack.c.h.b16 %v882
        %v1058 = vunpack.c.l.b16 %v883
        %v1059 = vunpack.c.h.b16 %v883
        %v1060 = vunpack.c.l.b16 %v884
        %v1061 = vunpack.c.h.b16 %v884
        %v1062 = vunpack.c.l.b16 %v885
        %v1063 = vunpack.c.h.b16 %v885
        %v1064 = vunpack.c.l.b16 %v886
        %v1065 = vunpack.c.h.b16 %v886
        %v1066 = vunpack.c.l.b16 %v887
        %v1067 = vunpack.c.h.b16 %v887
        %v1068 = vunpack.c.l.b16 %v888
        %v1069 = vunpack.c.h.b16 %v888
        %v1070 = vunpack.c.l.b16 %v889
        %v1071 = vunpack.c.h.b16 %v889
        %v1072 = vunpack.c.l.b16 %v890
        %v1073 = vunpack.c.h.b16 %v890
        %v1074 = vunpack.c.l.b16 %v891
        %v1075 = vunpack.c.h.b16 %v891
        %v1076 = vunpack.c.l.b16 %v892
        %v1077 = vunpack.c.h.b16 %v892
        %v1078 = vunpack.c.l.b16 %v893
        %v1079 = vunpack.c.h.b16 %v893
        %v1080 = vunpack.c.l.b16 %v894
        %v1081 = vunpack.c.h.b16 %v894
        %v1082 = vunpack.c.l.b16 %v895
        %v1083 = vunpack.c.h.b16 %v895
        %v1084 = vunpack.c.l.b16 %v896
        %v1085 = vunpack.c.h.b16 %v896
        %v1086 = vunpack.c.l.b16 %v897
        %v1087 = vunpack.c.h.b16 %v897
        %v1088 = vunpack.c.l.b16 %v898
        %v1089 = vunpack.c.h.b16 %v898
        %v1090 = vunpack.c.l.b16 %v899
        %v1091 = vunpack.c.h.b16 %v899
        %v1092 = vunpack.c.l.b16 %v900
        %v1093 = vunpack.c.h.b16 %v900
        %v1094 = vunpack.c.l.b16 %v901
        %v1095 = vunpack.c.h.b16 %v901
        %v1096 = vunpack.c.l.b16 %v902
        %v1097 = vunpack.c.h.b16 %v902
        %v1098 = vunpack.c.l.b16 %v903
        %v1099 = vunpack.c.h.b16 %v903
        %v1100 = vunpack.c.l.b16 %v904
        %v1101 = vunpack.c.h.b16 %v904
        %v1102 = vunpack.c.l.b16 %v905
        %v1103 = vunpack.c.h.b16 %v905
        %v1104 = vunpack.c.l.b16 %v906
        %v1105 = vunpack.c.h.b16 %v906
        %v1106 = vunpack.c.l.b16 %v907
        %v1107 = vunpack.c.h.b16 %v907
        %v1108 = vunpack.c.l.b16 %v908
        %v1109 = vunpack.c.h.b16 %v908
        %v1110 = vunpack.c.l.b16 %v909
        %v1111 = vunpack.c.h.b16 %v909
        %v1112 = vunpack.c.l.b16 %v910
        %v1113 = vunpack.c.h.b16 %v910
        %v1114 = vunpack.c.l.b16 %v911
        %v1115 = vunpack.c.h.b16 %v911
        %v1116 = vunpack.c.l.b16 %v912
        %v1117 = vunpack.c.h.b16 %v912
        %v1118 = vunpack.c.l.b16 %v913
        %v1119 = vunpack.c.h.b16 %v913
        %v1120 = vunpack.c.l.b16 %v914
        %v1121 = vunpack.c.h.b16 %v914
        %v1122 = vunpack.c.l.b16 %v915
        %v1123 = vunpack.c.h.b16 %v915
        %v1124 = vunpack.c.l.b16 %v916
        %v1125 = vunpack.c.h.b16 %v916
        %v1126 = vunpack.c.l.b16 %v917
        %v1127 = vunpack.c.h.b16 %v917
        %v1128 = vunpack.c.l.b16 %v918
        %v1129 = vunpack.c.h.b16 %v918
        %v1130 = vunpack.c.l.b16 %v919
        %v1131 = vunpack.c.h.b16 %v919
        %v1132 = vunpack.c.l.b16 %v920
        %v1133 = vunpack.c.h.b16 %v920
        %v1134 = vunpack.c.l.b16 %v921
        %v1135 = vunpack.c.h.b16 %v921
        %v1136 = vunpack.c.l.b16 %v922
        %v1137 = vunpack.c.h.b16 %v922
        %v1138 = vunpack.c.l.b16 %v923
        %v1139 = vunpack.c.h.b16 %v923
        %v1140 = vunpack.c.l.b16 %v924
        %v1141 = vunpack.c.h.b16 %v924
        %v1142 = vunpack.c.l.b16 %v925
        %v1143 = vunpack.c.h.b16 %v925
        %v1144 = vunpack.c.l.b16 %v926
        %v1145 = vunpack.c.h.b16 %v926
        %v1146 = vunpack.c.l.b16 %v927
        %v1147 = vunpack.c.h.b16 %v927
        %v1148 = vunpack.c.l.b16 %v928
        %v1149 = vunpack.c.h.b16 %v928
        %v1150 = vunpack.c.l.b16 %v929
        %v1151 = vunpack.c.h.b16 %v929
        %v1152 = vunpack.c.l.b16 %v930
        %v1153 = vunpack.c.h.b16 %v930
        %v1154 = vunpack.c.l.b16 %v931
        %v1155 = vunpack.c.h.b16 %v931
        %v1156 = vunpack.c.l.b16 %v932
        %v1157 = vunpack.c.h.b16 %v932
        %v1158 = vunpack.c.l.b16 %v933
        %v1159 = vunpack.c.h.b16 %v933
        %v1160 = vunpack.c.l.b16 %v934
        %v1161 = vunpack.c.h.b16 %v934
        %v1162 = vunpack.c.l.b16 %v935
        %v1163 = vunpack.c.h.b16 %v935
        %v1164 = vunpack.c.l.b16 %v936
        %v1165 = vunpack.c.h.b16 %v936
        %v1166 = vunpack.c.l.b16 %v937
        %v1167 = vunpack.c.h.b16 %v937
        %v1168 = vunpack.c.l.b16 %v938
        %v1169 = vunpack.c.h.b16 %v938
        %v1170 = vunpack.c.l.b16 %v939
        %v1171 = vunpack.c.h.b16 %v939
        %v1172 = vunpack.c.l.b16 %v940
        %v1173 = vunpack.c.h.b16 %v940
        %v1174 = vunpack.c.l.b16 %v941
        %v1175 = vunpack.c.h.b16 %v941
        %v1176 = vpack.c.b16 %v1056, %v1048
        %v1177 = vpack.c.b16 %v1057, %v1049
        %v1178 = vpack.c.b16 %v1058, %v1050
        %v1179 = vpack.c.b16 %v1059, %v1051
        %v1180 = vpack.c.b16 %v1060, %v1052
        %v1181 = vpack.c.b16 %v1061, %v1053
        %v1182 = vpack.c.b16 %v1062, %v1054
        %v1183 = vpack.c.b16 %v1063, %v1055
        %v1184 = vpack.c.b16 %v1072, %v1064
        %v1185 = vpack.c.b16 %v1073, %v1065
        %v1186 = vpack.c.b16 %v1074, %v1066
        %v1187 = vpack.c.b16 %v1075, %v1067
        %v1188 = vpack.c.b16 %v1076, %v1068
        %v1189 = vpack.c.b16 %v1077, %v1069
        %v1190 = vpack.c.b16 %v1078, %v1070
        %v1191 = vpack.c.b16 %v1079, %v1071
        %v1192 = vpack.c.b16 %v1088, %v1080
        %v1193 = vpack.c.b16 %v1089, %v1081
        %v1194 = vpack.c.b16 %v1090, %v1082
        %v1195 = vpack.c.b16 %v1091, %v1083
        %v1196 = vpack.c.b16 %v1092, %v1084
        %v1197 = vpack.c.b16 %v1093, %v1085
        %v1198 = vpack.c.b16 %v1094, %v1086
        %v1199 = vpack.c.b16 %v1095, %v1087
        %v1200 = vpack.c.b16 %v1104, %v1096
        %v1201 = vpack.c.b16 %v1105, %v1097
        %v1202 = vpack.c.b16 %v1106, %v1098
        %v1203 = vpack.c.b16 %v1107, %v1099
        %v1204 = vpack.c.b16 %v1108, %v1100
        %v1205 = vpack.c.b16 %v1109, %v1101
        %v1206 = vpack.c.b16 %v1110, %v1102
        %v1207 = vpack.c.b16 %v1111, %v1103
        %v1208 = vpack.c.b16 %v1120, %v1112
        %v1209 = vpack.c.b16 %v1121, %v1113
        %v1210 = vpack.c.b16 %v1122, %v1114
        %v1211 = vpack.c.b16 %v1123, %v1115
        %v1212 = vpack.c.b16 %v1124, %v1116
        %v1213 = vpack.c.b16 %v1125, %v1117
        %v1214 = vpack.c.b16 %v1126, %v1118
        %v1215 = vpack.c.b16 %v1127, %v1119
        %v1216 = vpack.c.b16 %v1136, %v1128
        %v1217 = vpack.c.b16 %v1137, %v1129
        %v1218 = vpack.c.b16 %v1138, %v1130
        %v1219 = vpack.c.b16 %v1139, %v1131
        %v1220 = vpack.c.b16 %v1140, %v1132
        %v1221 = vpack.c.b16 %v1141, %v1133
        %v1222 = vpack.c.b16 %v1142, %v1134
        %v1223 = vpack.c.b16 %v1143, %v1135
        %v1224 = vpack.c.b16 %v1152, %v1144
        %v1225 = vpack.c.b16 %v1153, %v1145
        %v1226 = vpack.c.b16 %v1154, %v1146
        %v1227 = vpack.c.b16 %v1155, %v1147
        %v1228 = vpack.c.b16 %v1156, %v1148
        %v1229 = vpack.c.b16 %v1157, %v1149
        %v1230 = vpack.c.b16 %v1158, %v1150
        %v1231 = vpack.c.b16 %v1159, %v1151
        %v1232 = vpack.c.b16 %v1168, %v1160
        %v1233 = vpack.c.b16 %v1169, %v1161
        %v1234 = vpack.c.b16 %v1170, %v1162
        %v1235 = vpack.c.b16 %v1171, %v1163
        %v1236 = vpack.c.b16 %v1172, %v1164
        %v1237 = vpack.c.b16 %v1173, %v1165
        %v1238 = vpack.c.b16 %v1174, %v1166
        %v1239 = vpack.c.b16 %v1175, %v1167
        %1304 = vmatprep.subr.bf16.mxu0 %v1177
        %1305 = vmatpush1.bf16.msra.mxu0 %v1176
        %1306 = vmatprep.subr.bf16.mxu0 %v1185
        %1307 = vmatpush1.bf16.msra.mxu0 %v1184
        %1308 = vmatprep.subr.bf16.mxu0 %v1193
        %1309 = vmatpush1.bf16.msra.mxu0 %v1192
        %1310 = vmatprep.subr.bf16.mxu0 %v1201
        %1311 = vmatpush1.bf16.msra.mxu0 %v1200
        %1312 = vmatprep.subr.bf16.mxu0 %v1209
        %1313 = vmatpush1.bf16.msra.mxu0 %v1208
        %1314 = vmatprep.subr.bf16.mxu0 %v1217
        %1315 = vmatpush1.bf16.msra.mxu0 %v1216
        %1316 = vmatprep.subr.bf16.mxu0 %v1225
        %1317 = vmatpush1.bf16.msra.mxu0 %v1224
        %1318 = vmatprep.subr.bf16.mxu0 %v1233
        %1319 = vmatpush1.bf16.msra.mxu0 %v1232
        %1320 = vmatprep.subr.bf16.mxu0 0
        %1321 = vmatpush1.bf16.msra.mxu0 0
        %1322 = vmatprep.subr.bf16.mxu0 0
        %1323 = vmatpush1.bf16.msra.mxu0 0
        %1324 = vmatprep.subr.bf16.mxu0 0
        %1325 = vmatpush1.bf16.msra.mxu0 0
        %1326 = vmatprep.subr.bf16.mxu0 0
        %1327 = vmatpush1.bf16.msra.mxu0 0
        %1328 = vmatprep.subr.bf16.mxu0 0
        %1329 = vmatpush1.bf16.msra.mxu0 0
        %1330 = vmatprep.subr.bf16.mxu0 0
        %1331 = vmatpush1.bf16.msra.mxu0 0
        %1332 = vmatprep.subr.bf16.mxu0 0
        %1333 = vmatpush1.bf16.msra.mxu0 0
        %1334 = vmatprep.subr.bf16.mxu0 0
        %1335 = vmatpush1.bf16.msra.mxu0 0
        %1336 = vmatprep.mubr.bf16.mxu0 0
        %1337 = vmatmul.mubr.bf16.gmra.mrb[0].mxu0 %v577
        %v1338 = vpop.f32.mrb[0].mxu0
        %v1339 = vadd.f32 %v947, %v1338
        %v1340 = vpop.f32.mrb[0].mxu0
        %v1341 = vadd.f32 %v951, %v1340
        %v1342 = vpop.f32.mrb[0].mxu0
        %v1343 = vpop.f32.mrb[0].mxu0
        %1344 = vdwg.mxu0
        %1345 = vmatprep.subr.bf16.mxu0 %v1179
        %1346 = vmatpush1.bf16.msra.mxu0 %v1178
        %1347 = vmatprep.subr.bf16.mxu0 %v1187
        %1348 = vmatpush1.bf16.msra.mxu0 %v1186
        %1349 = vmatprep.subr.bf16.mxu0 %v1195
        %1350 = vmatpush1.bf16.msra.mxu0 %v1194
        %1351 = vmatprep.subr.bf16.mxu0 %v1203
        %1352 = vmatpush1.bf16.msra.mxu0 %v1202
        %1353 = vmatprep.subr.bf16.mxu0 %v1211
        %1354 = vmatpush1.bf16.msra.mxu0 %v1210
        %1355 = vmatprep.subr.bf16.mxu0 %v1219
        %1356 = vmatpush1.bf16.msra.mxu0 %v1218
        %1357 = vmatprep.subr.bf16.mxu0 %v1227
        %1358 = vmatpush1.bf16.msra.mxu0 %v1226
        %1359 = vmatprep.subr.bf16.mxu0 %v1235
        %1360 = vmatpush1.bf16.msra.mxu0 %v1234
        %1361 = vmatprep.subr.bf16.mxu0 0
        %1362 = vmatpush1.bf16.msra.mxu0 0
        %1363 = vmatprep.subr.bf16.mxu0 0
        %1364 = vmatpush1.bf16.msra.mxu0 0
        %1365 = vmatprep.subr.bf16.mxu0 0
        %1366 = vmatpush1.bf16.msra.mxu0 0
        %1367 = vmatprep.subr.bf16.mxu0 0
        %1368 = vmatpush1.bf16.msra.mxu0 0
        %1369 = vmatprep.subr.bf16.mxu0 0
        %1370 = vmatpush1.bf16.msra.mxu0 0
        %1371 = vmatprep.subr.bf16.mxu0 0
        %1372 = vmatpush1.bf16.msra.mxu0 0
        %1373 = vmatprep.subr.bf16.mxu0 0
        %1374 = vmatpush1.bf16.msra.mxu0 0
        %1375 = vmatprep.subr.bf16.mxu0 0
        %1376 = vmatpush1.bf16.msra.mxu0 0
        %1377 = vmatprep.mubr.bf16.mxu0 0
        %1378 = vmatmul.mubr.bf16.gmra.mrb[0].mxu0 %v577
        %v1379 = vpop.f32.mrb[0].mxu0
        %v1380 = vadd.f32 %v955, %v1379
        %v1381 = vpop.f32.mrb[0].mxu0
        %v1382 = vadd.f32 %v959, %v1381
        %v1383 = vpop.f32.mrb[0].mxu0
        %v1384 = vpop.f32.mrb[0].mxu0
        %1385 = vdwg.mxu0
        %1386 = vmatprep.subr.bf16.mxu0 %v1181
        %1387 = vmatpush1.bf16.msra.mxu0 %v1180
        %1388 = vmatprep.subr.bf16.mxu0 %v1189
        %1389 = vmatpush1.bf16.msra.mxu0 %v1188
        %1390 = vmatprep.subr.bf16.mxu0 %v1197
        %1391 = vmatpush1.bf16.msra.mxu0 %v1196
        %1392 = vmatprep.subr.bf16.mxu0 %v1205
        %1393 = vmatpush1.bf16.msra.mxu0 %v1204
        %1394 = vmatprep.subr.bf16.mxu0 %v1213
        %1395 = vmatpush1.bf16.msra.mxu0 %v1212
        %1396 = vmatprep.subr.bf16.mxu0 %v1221
        %1397 = vmatpush1.bf16.msra.mxu0 %v1220
        %1398 = vmatprep.subr.bf16.mxu0 %v1229
        %1399 = vmatpush1.bf16.msra.mxu0 %v1228
        %1400 = vmatprep.subr.bf16.mxu0 %v1237
        %1401 = vmatpush1.bf16.msra.mxu0 %v1236
        %1402 = vmatprep.subr.bf16.mxu0 0
        %1403 = vmatpush1.bf16.msra.mxu0 0
        %1404 = vmatprep.subr.bf16.mxu0 0
        %1405 = vmatpush1.bf16.msra.mxu0 0
        %1406 = vmatprep.subr.bf16.mxu0 0
        %1407 = vmatpush1.bf16.msra.mxu0 0
        %1408 = vmatprep.subr.bf16.mxu0 0
        %1409 = vmatpush1.bf16.msra.mxu0 0
        %1410 = vmatprep.subr.bf16.mxu0 0
        %1411 = vmatpush1.bf16.msra.mxu0 0
        %1412 = vmatprep.subr.bf16.mxu0 0
        %1413 = vmatpush1.bf16.msra.mxu0 0
        %1414 = vmatprep.subr.bf16.mxu0 0
        %1415 = vmatpush1.bf16.msra.mxu0 0
        %1416 = vmatprep.subr.bf16.mxu0 0
        %1417 = vmatpush1.bf16.msra.mxu0 0
        %1418 = vmatprep.mubr.bf16.mxu0 0
        %1419 = vmatmul.mubr.bf16.gmra.mrb[0].mxu0 %v577
        %v1420 = vpop.f32.mrb[0].mxu0
        %v1421 = vadd.f32 %v963, %v1420
        %v1422 = vpop.f32.mrb[0].mxu0
        %v1423 = vadd.f32 %v967, %v1422
        %v1424 = vpop.f32.mrb[0].mxu0
        %v1425 = vpop.f32.mrb[0].mxu0
        %1426 = vdwg.mxu0
        %1427 = vmatprep.subr.bf16.mxu0 %v1183
        %1428 = vmatpush1.bf16.msra.mxu0 %v1182
        %1429 = vmatprep.subr.bf16.mxu0 %v1191
        %1430 = vmatpush1.bf16.msra.mxu0 %v1190
        %1431 = vmatprep.subr.bf16.mxu0 %v1199
        %1432 = vmatpush1.bf16.msra.mxu0 %v1198
        %1433 = vmatprep.subr.bf16.mxu0 %v1207
        %1434 = vmatpush1.bf16.msra.mxu0 %v1206
        %1435 = vmatprep.subr.bf16.mxu0 %v1215
        %1436 = vmatpush1.bf16.msra.mxu0 %v1214
        %1437 = vmatprep.subr.bf16.mxu0 %v1223
        %1438 = vmatpush1.bf16.msra.mxu0 %v1222
        %1439 = vmatprep.subr.bf16.mxu0 %v1231
        %1440 = vmatpush1.bf16.msra.mxu0 %v1230
        %1441 = vmatprep.subr.bf16.mxu0 %v1239
        %1442 = vmatpush1.bf16.msra.mxu0 %v1238
        %1443 = vmatprep.subr.bf16.mxu0 0
        %1444 = vmatpush1.bf16.msra.mxu0 0
        %1445 = vmatprep.subr.bf16.mxu0 0
        %1446 = vmatpush1.bf16.msra.mxu0 0
        %1447 = vmatprep.subr.bf16.mxu0 0
        %1448 = vmatpush1.bf16.msra.mxu0 0
        %1449 = vmatprep.subr.bf16.mxu0 0
        %1450 = vmatpush1.bf16.msra.mxu0 0
        %1451 = vmatprep.subr.bf16.mxu0 0
        %1452 = vmatpush1.bf16.msra.mxu0 0
        %1453 = vmatprep.subr.bf16.mxu0 0
        %1454 = vmatpush1.bf16.msra.mxu0 0
        %1455 = vmatprep.subr.bf16.mxu0 0
        %1456 = vmatpush1.bf16.msra.mxu0 0
        %1457 = vmatprep.subr.bf16.mxu0 0
        %1458 = vmatpush1.bf16.msra.mxu0 0
        %1459 = vmatprep.mubr.bf16.mxu0 0
        %1460 = vmatmul.mubr.bf16.gmra.mrb[0].mxu0 %v577
        %v1461 = vpop.f32.mrb[0].mxu0
        %v1462 = vadd.f32 %v971, %v1461
        %v1463 = vpop.f32.mrb[0].mxu0
        %v1464 = vadd.f32 %v975, %v1463
        %v1465 = vpop.f32.mrb[0].mxu0
        %v1466 = vpop.f32.mrb[0].mxu0
        %1467 = vdwg.mxu0
        %v1468 = vpack.c.bf16 %v1339, %v1339
        %v1469 = vpack.c.bf16 %v1341, %v1341
        %v1470 = vpack.c.bf16 %v1380, %v1380
        %v1471 = vpack.c.bf16 %v1382, %v1382
        %v1472 = vpack.c.bf16 %v1421, %v1421
        %v1473 = vpack.c.bf16 %v1423, %v1423
        %v1474 = vpack.c.bf16 %v1462, %v1462
        %v1475 = vpack.c.bf16 %v1464, %v1464
        %v1476 = vld [vmem:[%s525] sm:$0x1]
        %vm1477 = vcmp.ne.s32.totalorder %v1476, 0
        %1478 = vmatprep.subr.bf16.mxu0 0
        %1479 = vmatpush1.bf16.xpose.msra.mxu0 %v1468
        %1480 = vmatprep.subr.bf16.mxu0 0
        %1481 = vmatpush1.bf16.xpose.msra.mxu0 0
        %1482 = vmatprep.subr.bf16.mxu0 0
        %1483 = vmatpush1.bf16.xpose.msra.mxu0 0
        %1484 = vmatprep.subr.bf16.mxu0 0
        %1485 = vmatpush1.bf16.xpose.msra.mxu0 0
        %1486 = vmatprep.subr.bf16.mxu0 0
        %1487 = vmatpush1.bf16.xpose.msra.mxu0 0
        %1488 = vmatprep.subr.bf16.mxu0 0
        %1489 = vmatpush1.bf16.xpose.msra.mxu0 0
        %1490 = vmatprep.subr.bf16.mxu0 0
        %1491 = vmatpush1.bf16.xpose.msra.mxu0 0
        %1492 = vmatprep.subr.bf16.mxu0 0
        %1493 = vmatpush1.bf16.xpose.msra.mxu0 0
        %1494 = vmatprep.subr.bf16.mxu0 0
        %1495 = vmatpush1.bf16.xpose.msra.mxu0 0
        %1496 = vmatprep.subr.bf16.mxu0 0
        %1497 = vmatpush1.bf16.xpose.msra.mxu0 0
        %1498 = vmatprep.subr.bf16.mxu0 0
        %1499 = vmatpush1.bf16.xpose.msra.mxu0 0
        %1500 = vmatprep.subr.bf16.mxu0 0
        %1501 = vmatpush1.bf16.xpose.msra.mxu0 0
        %1502 = vmatprep.subr.bf16.mxu0 0
        %1503 = vmatpush1.bf16.xpose.msra.mxu0 0
        %1504 = vmatprep.subr.bf16.mxu0 0
        %1505 = vmatpush1.bf16.xpose.msra.mxu0 0
        %1506 = vmatprep.subr.bf16.mxu0 0
        %1507 = vmatpush1.bf16.xpose.msra.mxu0 0
        %1508 = vmatprep.subr.bf16.mxu0 0
        %1509 = vmatpush1.bf16.xpose.msra.mxu0 0
        %1510 = vmatprep.mubr.bf16.mxu0 0
        %1511 = vmatmul.mubr.bf16.gmra.mrb[0].mxu0 %v874
        %v1512 = vpop.f32.mrb[0].mxu0
        %v1513 = vadd.f32 0.0, %v1512
        %v1514 = vpop.f32.mrb[0].mxu0
        %v1515 = vpop.f32.mrb[0].mxu0
        %v1516 = vpop.f32.mrb[0].mxu0
        %1517 = vdwg.mxu0
        %v1518 = vmul.f32 %v1513, 0.35355338
        %v1519 = vsel %vm1477, 1, 0
        %v1520 = vlaneseq
        %v1521 = vshrl.u32 %v1520, 7
        %v1522 = vsub.s32 0, %v1521
        %v1523 = vrot.slane %v1519, %v1522
        %vm1524 = vcmp.eq.s32.totalorder %v1523, 1
        %v1525 = vsel %vm1524, %v1518, -1e+30
        %vm1526 = vcmask 64512
        %v1527 = vsel %vm1526, %v1525, -inf
        %1528 = vmax.xlane.f32.xlu0 %v1527
        %v1529 = vpop.xlane.xlu0 %1528
        %v1530 = vsub.f32 %v1525, %v1529
        %v1531 = vmul.f32 %v1530, 1.442695
        %v1532 = vpow.pop %v1531
        %v1533 = vsel %vm1526, %v1532, 0.0
        %1534 = vadd.xlane.f32.xlu0 %v1533
        %v1535 = vpop.xlane.xlu0 %1534
        %v1536 = vrcp.pop %v1535
        %v1537 = vmul.f32 %v1532, %v1536
        %v1538 = vpack.c.bf16 %v1537, %v1537
        %v1540 = vsel %vm1526, %v1538, 0
        %vm1542 = vcmask 1043456
        %v1544 = vsel %vm1542, %v1472, 0
        %1546 = vmatprep.subr.bf16.mxu0 0
        %1547 = vmatpush1.bf16.msra.mxu0 %v1544
        %1548 = vmatprep.subr.bf16.mxu0 0
        %1549 = vmatpush1.bf16.msra.mxu0 0
        %1550 = vmatprep.subr.bf16.mxu0 0
        %1551 = vmatpush1.bf16.msra.mxu0 0
        %1552 = vmatprep.subr.bf16.mxu0 0
        %1553 = vmatpush1.bf16.msra.mxu0 0
        %1554 = vmatprep.subr.bf16.mxu0 0
        %1555 = vmatpush1.bf16.msra.mxu0 0
        %1556 = vmatprep.subr.bf16.mxu0 0
        %1557 = vmatpush1.bf16.msra.mxu0 0
        %1558 = vmatprep.subr.bf16.mxu0 0
        %1559 = vmatpush1.bf16.msra.mxu0 0
        %1560 = vmatprep.subr.bf16.mxu0 0
        %1561 = vmatpush1.bf16.msra.mxu0 0
        %1562 = vmatprep.subr.bf16.mxu0 0
        %1563 = vmatpush1.bf16.msra.mxu0 0
        %1564 = vmatprep.subr.bf16.mxu0 0
        %1565 = vmatpush1.bf16.msra.mxu0 0
        %1566 = vmatprep.subr.bf16.mxu0 0
        %1567 = vmatpush1.bf16.msra.mxu0 0
        %1568 = vmatprep.subr.bf16.mxu0 0
        %1569 = vmatpush1.bf16.msra.mxu0 0
        %1570 = vmatprep.subr.bf16.mxu0 0
        %1571 = vmatpush1.bf16.msra.mxu0 0
        %1572 = vmatprep.subr.bf16.mxu0 0
        %1573 = vmatpush1.bf16.msra.mxu0 0
        %1574 = vmatprep.subr.bf16.mxu0 0
        %1575 = vmatpush1.bf16.msra.mxu0 0
        %1576 = vmatprep.subr.bf16.mxu0 0
        %1577 = vmatpush1.bf16.msra.mxu0 0
        %1578 = vmatprep.mubr.bf16.mxu0 0
        %1579 = vmatmul.mubr.bf16.gmra.mrb[0].mxu0 %v1540
        %v1580 = vpop.f32.mrb[0].mxu0
        %v1581 = vadd.f32 0.0, %v1580
        %v1582 = vpop.f32.mrb[0].mxu0
        %v1583 = vpop.f32.mrb[0].mxu0
        %v1584 = vpop.f32.mrb[0].mxu0
        %1585 = vdwg.mxu0
        %v1586 = vpack.c.bf16 %v1581, %v1581
        %v1587 = vld [vmem:[#allocation11] sm:$0xf]
        %v1588 = vld [vmem:[#allocation11 + $0x4] sm:$0xf]
        %v1589 = vld [vmem:[#allocation11 + $0x8] sm:$0xf]
        %v1590 = vld [vmem:[#allocation11 + $0xc] sm:$0xf]
        %v1591 = vld [vmem:[#allocation11 + $0x10] sm:$0xf]
        %v1592 = vld [vmem:[#allocation11 + $0x14] sm:$0xf]
        %v1593 = vld [vmem:[#allocation11 + $0x18] sm:$0xf]
        %v1594 = vld [vmem:[#allocation11 + $0x1c] sm:$0xf]
        %v1595 = vld [vmem:[#allocation11 + $0x20] sm:$0xf]
        %v1596 = vld [vmem:[#allocation11 + $0x24] sm:$0xf]
        %v1597 = vld [vmem:[#allocation11 + $0x28] sm:$0xf]
        %v1598 = vld [vmem:[#allocation11 + $0x2c] sm:$0xf]
        %v1599 = vld [vmem:[#allocation11 + $0x30] sm:$0xf]
        %v1600 = vld [vmem:[#allocation11 + $0x34] sm:$0xf]
        %v1601 = vld [vmem:[#allocation11 + $0x38] sm:$0xf]
        %v1602 = vld [vmem:[#allocation11 + $0x3c] sm:$0xf]
        %1603 = vmatprep.subr.bf16.mxu0 0
        %1604 = vmatpush1.bf16.xpose.msra.mxu0 %v1469
        %1605 = vmatprep.subr.bf16.mxu0 0
        %1606 = vmatpush1.bf16.xpose.msra.mxu0 0
        %1607 = vmatprep.subr.bf16.mxu0 0
        %1608 = vmatpush1.bf16.xpose.msra.mxu0 0
        %1609 = vmatprep.subr.bf16.mxu0 0
        %1610 = vmatpush1.bf16.xpose.msra.mxu0 0
        %1611 = vmatprep.subr.bf16.mxu0 0
        %1612 = vmatpush1.bf16.xpose.msra.mxu0 0
        %1613 = vmatprep.subr.bf16.mxu0 0
        %1614 = vmatpush1.bf16.xpose.msra.mxu0 0
        %1615 = vmatprep.subr.bf16.mxu0 0
        %1616 = vmatpush1.bf16.xpose.msra.mxu0 0
        %1617 = vmatprep.subr.bf16.mxu0 0
        %1618 = vmatpush1.bf16.xpose.msra.mxu0 0
        %1619 = vmatprep.subr.bf16.mxu0 0
        %1620 = vmatpush1.bf16.xpose.msra.mxu0 0
        %1621 = vmatprep.subr.bf16.mxu0 0
        %1622 = vmatpush1.bf16.xpose.msra.mxu0 0
        %1623 = vmatprep.subr.bf16.mxu0 0
        %1624 = vmatpush1.bf16.xpose.msra.mxu0 0
        %1625 = vmatprep.subr.bf16.mxu0 0
        %1626 = vmatpush1.bf16.xpose.msra.mxu0 0
        %1627 = vmatprep.subr.bf16.mxu0 0
        %1628 = vmatpush1.bf16.xpose.msra.mxu0 0
        %1629 = vmatprep.subr.bf16.mxu0 0
        %1630 = vmatpush1.bf16.xpose.msra.mxu0 0
        %1631 = vmatprep.subr.bf16.mxu0 0
        %1632 = vmatpush1.bf16.xpose.msra.mxu0 0
        %1633 = vmatprep.subr.bf16.mxu0 0
        %1634 = vmatpush1.bf16.xpose.msra.mxu0 0
        %1635 = vmatprep.mubr.bf16.mxu0 0
        %1636 = vmatmul.mubr.bf16.gmra.mrb[0].mxu0 %v875
        %v1637 = vpop.f32.mrb[0].mxu0
        %v1638 = vadd.f32 0.0, %v1637
        %v1639 = vpop.f32.mrb[0].mxu0
        %v1640 = vpop.f32.mrb[0].mxu0
        %v1641 = vpop.f32.mrb[0].mxu0
        %1642 = vdwg.mxu0
        %v1643 = vmul.f32 %v1638, 0.35355338
        %v1644 = vsel %vm1524, %v1643, -1e+30
        %v1645 = vsel %vm1526, %v1644, -inf
        %1646 = vmax.xlane.f32.xlu0 %v1645
        %v1647 = vpop.xlane.xlu0 %1646
        %v1648 = vsub.f32 %v1644, %v1647
        %v1649 = vmul.f32 %v1648, 1.442695
        %v1650 = vpow.pop %v1649
        %v1651 = vsel %vm1526, %v1650, 0.0
        %1652 = vadd.xlane.f32.xlu0 %v1651
        %v1653 = vpop.xlane.xlu0 %1652
        %v1654 = vrcp.pop %v1653
        %v1655 = vmul.f32 %v1650, %v1654
        %v1656 = vpack.c.bf16 %v1655, %v1655
        %v1658 = vsel %vm1526, %v1656, 0
        %v1661 = vsel %vm1542, %v1473, 0
        %1663 = vmatprep.subr.bf16.mxu0 0
        %1664 = vmatpush1.bf16.msra.mxu0 %v1661
        %1665 = vmatprep.subr.bf16.mxu0 0
        %1666 = vmatpush1.bf16.msra.mxu0 0
        %1667 = vmatprep.subr.bf16.mxu0 0
        %1668 = vmatpush1.bf16.msra.mxu0 0
        %1669 = vmatprep.subr.bf16.mxu0 0
        %1670 = vmatpush1.bf16.msra.mxu0 0
        %1671 = vmatprep.subr.bf16.mxu0 0
        %1672 = vmatpush1.bf16.msra.mxu0 0
        %1673 = vmatprep.subr.bf16.mxu0 0
        %1674 = vmatpush1.bf16.msra.mxu0 0
        %1675 = vmatprep.subr.bf16.mxu0 0
        %1676 = vmatpush1.bf16.msra.mxu0 0
        %1677 = vmatprep.subr.bf16.mxu0 0
        %1678 = vmatpush1.bf16.msra.mxu0 0
        %1679 = vmatprep.subr.bf16.mxu0 0
        %1680 = vmatpush1.bf16.msra.mxu0 0
        %1681 = vmatprep.subr.bf16.mxu0 0
        %1682 = vmatpush1.bf16.msra.mxu0 0
        %1683 = vmatprep.subr.bf16.mxu0 0
        %1684 = vmatpush1.bf16.msra.mxu0 0
        %1685 = vmatprep.subr.bf16.mxu0 0
        %1686 = vmatpush1.bf16.msra.mxu0 0
        %1687 = vmatprep.subr.bf16.mxu0 0
        %1688 = vmatpush1.bf16.msra.mxu0 0
        %1689 = vmatprep.subr.bf16.mxu0 0
        %1690 = vmatpush1.bf16.msra.mxu0 0
        %1691 = vmatprep.subr.bf16.mxu0 0
        %1692 = vmatpush1.bf16.msra.mxu0 0
        %1693 = vmatprep.subr.bf16.mxu0 0
        %1694 = vmatpush1.bf16.msra.mxu0 0
        %1695 = vmatprep.mubr.bf16.mxu0 0
        %1696 = vmatmul.mubr.bf16.gmra.mrb[0].mxu0 %v1658
        %v1697 = vpop.f32.mrb[0].mxu0
        %v1698 = vadd.f32 0.0, %v1697
        %v1699 = vpop.f32.mrb[0].mxu0
        %v1700 = vpop.f32.mrb[0].mxu0
        %v1701 = vpop.f32.mrb[0].mxu0
        %1702 = vdwg.mxu0
        %v1703 = vpack.c.bf16 %v1698, %v1698
        %s1704 = scalar_lea.vmem [#allocation11], 64
        %v1705 = vld [vmem:[%s1704] sm:$0xf]
        %v1706 = vld [vmem:[%s1704 + $0x4] sm:$0xf]
        %v1707 = vld [vmem:[%s1704 + $0x8] sm:$0xf]
        %v1708 = vld [vmem:[%s1704 + $0xc] sm:$0xf]
        %v1709 = vld [vmem:[%s1704 + $0x10] sm:$0xf]
        %v1710 = vld [vmem:[%s1704 + $0x14] sm:$0xf]
        %v1711 = vld [vmem:[%s1704 + $0x18] sm:$0xf]
        %v1712 = vld [vmem:[%s1704 + $0x1c] sm:$0xf]
        %v1713 = vld [vmem:[%s1704 + $0x20] sm:$0xf]
        %v1714 = vld [vmem:[%s1704 + $0x24] sm:$0xf]
        %v1715 = vld [vmem:[%s1704 + $0x28] sm:$0xf]
        %v1716 = vld [vmem:[%s1704 + $0x2c] sm:$0xf]
        %v1717 = vld [vmem:[%s1704 + $0x30] sm:$0xf]
        %v1718 = vld [vmem:[%s1704 + $0x34] sm:$0xf]
        %v1719 = vld [vmem:[%s1704 + $0x38] sm:$0xf]
        %v1720 = vld [vmem:[%s1704 + $0x3c] sm:$0xf]
        %v1737 = vunpack.c.l.b16 %v1705
        %v1738 = vunpack.c.l.b16 %v1706
        %v1739 = vunpack.c.l.b16 %v1707
        %v1740 = vunpack.c.l.b16 %v1708
        %v1741 = vunpack.c.l.b16 %v1709
        %v1742 = vunpack.c.l.b16 %v1710
        %v1743 = vunpack.c.l.b16 %v1711
        %v1744 = vunpack.c.l.b16 %v1712
        %v1745 = vunpack.c.l.b16 %v1713
        %v1746 = vunpack.c.l.b16 %v1714
        %v1747 = vunpack.c.l.b16 %v1715
        %v1748 = vunpack.c.l.b16 %v1716
        %v1749 = vunpack.c.l.b16 %v1717
        %v1750 = vunpack.c.l.b16 %v1718
        %v1751 = vunpack.c.l.b16 %v1719
        %v1752 = vunpack.c.l.b16 %v1720
        %v1753 = vpack.c.b16 %v1738, %v1737
        %v1754 = vpack.c.b16 %v1740, %v1739
        %v1755 = vpack.c.b16 %v1742, %v1741
        %v1756 = vpack.c.b16 %v1744, %v1743
        %v1757 = vpack.c.b16 %v1746, %v1745
        %v1758 = vpack.c.b16 %v1748, %v1747
        %v1759 = vpack.c.b16 %v1750, %v1749
        %v1760 = vpack.c.b16 %v1752, %v1751
        %1769 = vmatprep.subr.bf16.mxu0 0
        %1770 = vmatpush1.bf16.msra.mxu0 %v1753
        %1771 = vmatprep.subr.bf16.mxu0 0
        %1772 = vmatpush1.bf16.msra.mxu0 %v1754
        %1773 = vmatprep.subr.bf16.mxu0 0
        %1774 = vmatpush1.bf16.msra.mxu0 %v1755
        %1775 = vmatprep.subr.bf16.mxu0 0
        %1776 = vmatpush1.bf16.msra.mxu0 %v1756
        %1777 = vmatprep.subr.bf16.mxu0 0
        %1778 = vmatpush1.bf16.msra.mxu0 %v1757
        %1779 = vmatprep.subr.bf16.mxu0 0
        %1780 = vmatpush1.bf16.msra.mxu0 %v1758
        %1781 = vmatprep.subr.bf16.mxu0 0
        %1782 = vmatpush1.bf16.msra.mxu0 %v1759
        %1783 = vmatprep.subr.bf16.mxu0 0
        %1784 = vmatpush1.bf16.msra.mxu0 %v1760
        %1785 = vmatprep.subr.bf16.mxu0 0
        %1786 = vmatpush1.bf16.msra.mxu0 0
        %1787 = vmatprep.subr.bf16.mxu0 0
        %1788 = vmatpush1.bf16.msra.mxu0 0
        %1789 = vmatprep.subr.bf16.mxu0 0
        %1790 = vmatpush1.bf16.msra.mxu0 0
        %1791 = vmatprep.subr.bf16.mxu0 0
        %1792 = vmatpush1.bf16.msra.mxu0 0
        %1793 = vmatprep.subr.bf16.mxu0 0
        %1794 = vmatpush1.bf16.msra.mxu0 0
        %1795 = vmatprep.subr.bf16.mxu0 0
        %1796 = vmatpush1.bf16.msra.mxu0 0
        %1797 = vmatprep.subr.bf16.mxu0 0
        %1798 = vmatpush1.bf16.msra.mxu0 0
        %1799 = vmatprep.subr.bf16.mxu0 0
        %1800 = vmatpush1.bf16.msra.mxu0 0
        %1801 = vmatprep.mubr.bf16.mxu0 0
        %1802 = vmatmul.mubr.bf16.gmra.mrb[0].mxu0 %v1703
        %v1803 = vpop.f32.mrb[0].mxu0
        %v1804 = vadd.f32 0.0, %v1803
        %v1805 = vpop.f32.mrb[0].mxu0
        %v1806 = vpop.f32.mrb[0].mxu0
        %v1807 = vpop.f32.mrb[0].mxu0
        %1808 = vdwg.mxu0
        %v1825 = vunpack.c.l.b16 %v1587
        %v1826 = vunpack.c.l.b16 %v1588
        %v1827 = vunpack.c.l.b16 %v1589
        %v1828 = vunpack.c.l.b16 %v1590
        %v1829 = vunpack.c.l.b16 %v1591
        %v1830 = vunpack.c.l.b16 %v1592
        %v1831 = vunpack.c.l.b16 %v1593
        %v1832 = vunpack.c.l.b16 %v1594
        %v1833 = vunpack.c.l.b16 %v1595
        %v1834 = vunpack.c.l.b16 %v1596
        %v1835 = vunpack.c.l.b16 %v1597
        %v1836 = vunpack.c.l.b16 %v1598
        %v1837 = vunpack.c.l.b16 %v1599
        %v1838 = vunpack.c.l.b16 %v1600
        %v1839 = vunpack.c.l.b16 %v1601
        %v1840 = vunpack.c.l.b16 %v1602
        %v1841 = vpack.c.b16 %v1826, %v1825
        %v1842 = vpack.c.b16 %v1828, %v1827
        %v1843 = vpack.c.b16 %v1830, %v1829
        %v1844 = vpack.c.b16 %v1832, %v1831
        %v1845 = vpack.c.b16 %v1834, %v1833
        %v1846 = vpack.c.b16 %v1836, %v1835
        %v1847 = vpack.c.b16 %v1838, %v1837
        %v1848 = vpack.c.b16 %v1840, %v1839
        %1857 = vmatprep.subr.bf16.mxu0 0
        %1858 = vmatpush1.bf16.msra.mxu0 %v1841
        %1859 = vmatprep.subr.bf16.mxu0 0
        %1860 = vmatpush1.bf16.msra.mxu0 %v1842
        %1861 = vmatprep.subr.bf16.mxu0 0
        %1862 = vmatpush1.bf16.msra.mxu0 %v1843
        %1863 = vmatprep.subr.bf16.mxu0 0
        %1864 = vmatpush1.bf16.msra.mxu0 %v1844
        %1865 = vmatprep.subr.bf16.mxu0 0
        %1866 = vmatpush1.bf16.msra.mxu0 %v1845
        %1867 = vmatprep.subr.bf16.mxu0 0
        %1868 = vmatpush1.bf16.msra.mxu0 %v1846
        %1869 = vmatprep.subr.bf16.mxu0 0
        %1870 = vmatpush1.bf16.msra.mxu0 %v1847
        %1871 = vmatprep.subr.bf16.mxu0 0
        %1872 = vmatpush1.bf16.msra.mxu0 %v1848
        %1873 = vmatprep.subr.bf16.mxu0 0
        %1874 = vmatpush1.bf16.msra.mxu0 0
        %1875 = vmatprep.subr.bf16.mxu0 0
        %1876 = vmatpush1.bf16.msra.mxu0 0
        %1877 = vmatprep.subr.bf16.mxu0 0
        %1878 = vmatpush1.bf16.msra.mxu0 0
        %1879 = vmatprep.subr.bf16.mxu0 0
        %1880 = vmatpush1.bf16.msra.mxu0 0
        %1881 = vmatprep.subr.bf16.mxu0 0
        %1882 = vmatpush1.bf16.msra.mxu0 0
        %1883 = vmatprep.subr.bf16.mxu0 0
        %1884 = vmatpush1.bf16.msra.mxu0 0
        %1885 = vmatprep.subr.bf16.mxu0 0
        %1886 = vmatpush1.bf16.msra.mxu0 0
        %1887 = vmatprep.subr.bf16.mxu0 0
        %1888 = vmatpush1.bf16.msra.mxu0 0
        %1889 = vmatprep.mubr.bf16.mxu0 0
        %1890 = vmatmul.mubr.bf16.gmra.mrb[0].mxu0 %v1586
        %v1891 = vpop.f32.mrb[0].mxu0
        %v1892 = vadd.f32 %v1804, %v1891
        %v1893 = vpop.f32.mrb[0].mxu0
        %v1894 = vpop.f32.mrb[0].mxu0
        %v1895 = vpop.f32.mrb[0].mxu0
        %1896 = vdwg.mxu0
        %1897 = vmatprep.subr.bf16.mxu0 0
        %1898 = vmatpush1.bf16.xpose.msra.mxu0 %v1470
        %1899 = vmatprep.subr.bf16.mxu0 0
        %1900 = vmatpush1.bf16.xpose.msra.mxu0 0
        %1901 = vmatprep.subr.bf16.mxu0 0
        %1902 = vmatpush1.bf16.xpose.msra.mxu0 0
        %1903 = vmatprep.subr.bf16.mxu0 0
        %1904 = vmatpush1.bf16.xpose.msra.mxu0 0
        %1905 = vmatprep.subr.bf16.mxu0 0
        %1906 = vmatpush1.bf16.xpose.msra.mxu0 0
        %1907 = vmatprep.subr.bf16.mxu0 0
        %1908 = vmatpush1.bf16.xpose.msra.mxu0 0
        %1909 = vmatprep.subr.bf16.mxu0 0
        %1910 = vmatpush1.bf16.xpose.msra.mxu0 0
        %1911 = vmatprep.subr.bf16.mxu0 0
        %1912 = vmatpush1.bf16.xpose.msra.mxu0 0
        %1913 = vmatprep.subr.bf16.mxu0 0
        %1914 = vmatpush1.bf16.xpose.msra.mxu0 0
        %1915 = vmatprep.subr.bf16.mxu0 0
        %1916 = vmatpush1.bf16.xpose.msra.mxu0 0
        %1917 = vmatprep.subr.bf16.mxu0 0
        %1918 = vmatpush1.bf16.xpose.msra.mxu0 0
        %1919 = vmatprep.subr.bf16.mxu0 0
        %1920 = vmatpush1.bf16.xpose.msra.mxu0 0
        %1921 = vmatprep.subr.bf16.mxu0 0
        %1922 = vmatpush1.bf16.xpose.msra.mxu0 0
        %1923 = vmatprep.subr.bf16.mxu0 0
        %1924 = vmatpush1.bf16.xpose.msra.mxu0 0
        %1925 = vmatprep.subr.bf16.mxu0 0
        %1926 = vmatpush1.bf16.xpose.msra.mxu0 0
        %1927 = vmatprep.subr.bf16.mxu0 0
        %1928 = vmatpush1.bf16.xpose.msra.mxu0 0
        %1929 = vmatprep.mubr.bf16.mxu0 0
        %1930 = vmatmul.mubr.bf16.gmra.mrb[0].mxu0 %v876
        %v1931 = vpop.f32.mrb[0].mxu0
        %v1932 = vadd.f32 0.0, %v1931
        %v1933 = vpop.f32.mrb[0].mxu0
        %v1934 = vpop.f32.mrb[0].mxu0
        %v1935 = vpop.f32.mrb[0].mxu0
        %1936 = vdwg.mxu0
        %v1937 = vmul.f32 %v1932, 0.35355338
        %v1938 = vsel %vm1524, %v1937, -1e+30
        %v1939 = vsel %vm1526, %v1938, -inf
        %1940 = vmax.xlane.f32.xlu0 %v1939
        %v1941 = vpop.xlane.xlu0 %1940
        %v1942 = vsub.f32 %v1938, %v1941
        %v1943 = vmul.f32 %v1942, 1.442695
        %v1944 = vpow.pop %v1943
        %v1945 = vsel %vm1526, %v1944, 0.0
        %1946 = vadd.xlane.f32.xlu0 %v1945
        %v1947 = vpop.xlane.xlu0 %1946
        %v1948 = vrcp.pop %v1947
        %v1949 = vmul.f32 %v1944, %v1948
        %v1950 = vpack.c.bf16 %v1949, %v1949
        %v1952 = vsel %vm1526, %v1950, 0
        %v1955 = vsel %vm1542, %v1474, 0
        %1957 = vmatprep.subr.bf16.mxu0 0
        %1958 = vmatpush1.bf16.msra.mxu0 %v1955
        %1959 = vmatprep.subr.bf16.mxu0 0
        %1960 = vmatpush1.bf16.msra.mxu0 0
        %1961 = vmatprep.subr.bf16.mxu0 0
        %1962 = vmatpush1.bf16.msra.mxu0 0
        %1963 = vmatprep.subr.bf16.mxu0 0
        %1964 = vmatpush1.bf16.msra.mxu0 0
        %1965 = vmatprep.subr.bf16.mxu0 0
        %1966 = vmatpush1.bf16.msra.mxu0 0
        %1967 = vmatprep.subr.bf16.mxu0 0
        %1968 = vmatpush1.bf16.msra.mxu0 0
        %1969 = vmatprep.subr.bf16.mxu0 0
        %1970 = vmatpush1.bf16.msra.mxu0 0
        %1971 = vmatprep.subr.bf16.mxu0 0
        %1972 = vmatpush1.bf16.msra.mxu0 0
        %1973 = vmatprep.subr.bf16.mxu0 0
        %1974 = vmatpush1.bf16.msra.mxu0 0
        %1975 = vmatprep.subr.bf16.mxu0 0
        %1976 = vmatpush1.bf16.msra.mxu0 0
        %1977 = vmatprep.subr.bf16.mxu0 0
        %1978 = vmatpush1.bf16.msra.mxu0 0
        %1979 = vmatprep.subr.bf16.mxu0 0
        %1980 = vmatpush1.bf16.msra.mxu0 0
        %1981 = vmatprep.subr.bf16.mxu0 0
        %1982 = vmatpush1.bf16.msra.mxu0 0
        %1983 = vmatprep.subr.bf16.mxu0 0
        %1984 = vmatpush1.bf16.msra.mxu0 0
        %1985 = vmatprep.subr.bf16.mxu0 0
        %1986 = vmatpush1.bf16.msra.mxu0 0
        %1987 = vmatprep.subr.bf16.mxu0 0
        %1988 = vmatpush1.bf16.msra.mxu0 0
        %1989 = vmatprep.mubr.bf16.mxu0 0
        %1990 = vmatmul.mubr.bf16.gmra.mrb[0].mxu0 %v1952
        %v1991 = vpop.f32.mrb[0].mxu0
        %v1992 = vadd.f32 0.0, %v1991
        %v1993 = vpop.f32.mrb[0].mxu0
        %v1994 = vpop.f32.mrb[0].mxu0
        %v1995 = vpop.f32.mrb[0].mxu0
        %1996 = vdwg.mxu0
        %v1997 = vpack.c.bf16 %v1992, %v1992
        %s1998 = scalar_lea.vmem [#allocation11], 128
        %v1999 = vld [vmem:[%s1998] sm:$0xf]
        %v2000 = vld [vmem:[%s1998 + $0x4] sm:$0xf]
        %v2001 = vld [vmem:[%s1998 + $0x8] sm:$0xf]
        %v2002 = vld [vmem:[%s1998 + $0xc] sm:$0xf]
        %v2003 = vld [vmem:[%s1998 + $0x10] sm:$0xf]
        %v2004 = vld [vmem:[%s1998 + $0x14] sm:$0xf]
        %v2005 = vld [vmem:[%s1998 + $0x18] sm:$0xf]
        %v2006 = vld [vmem:[%s1998 + $0x1c] sm:$0xf]
        %v2007 = vld [vmem:[%s1998 + $0x20] sm:$0xf]
        %v2008 = vld [vmem:[%s1998 + $0x24] sm:$0xf]
        %v2009 = vld [vmem:[%s1998 + $0x28] sm:$0xf]
        %v2010 = vld [vmem:[%s1998 + $0x2c] sm:$0xf]
        %v2011 = vld [vmem:[%s1998 + $0x30] sm:$0xf]
        %v2012 = vld [vmem:[%s1998 + $0x34] sm:$0xf]
        %v2013 = vld [vmem:[%s1998 + $0x38] sm:$0xf]
        %v2014 = vld [vmem:[%s1998 + $0x3c] sm:$0xf]
        %v2031 = vunpack.c.l.b16 %v1999
        %v2032 = vunpack.c.l.b16 %v2000
        %v2033 = vunpack.c.l.b16 %v2001
        %v2034 = vunpack.c.l.b16 %v2002
        %v2035 = vunpack.c.l.b16 %v2003
        %v2036 = vunpack.c.l.b16 %v2004
        %v2037 = vunpack.c.l.b16 %v2005
        %v2038 = vunpack.c.l.b16 %v2006
        %v2039 = vunpack.c.l.b16 %v2007
        %v2040 = vunpack.c.l.b16 %v2008
        %v2041 = vunpack.c.l.b16 %v2009
        %v2042 = vunpack.c.l.b16 %v2010
        %v2043 = vunpack.c.l.b16 %v2011
        %v2044 = vunpack.c.l.b16 %v2012
        %v2045 = vunpack.c.l.b16 %v2013
        %v2046 = vunpack.c.l.b16 %v2014
        %v2047 = vpack.c.b16 %v2032, %v2031
        %v2048 = vpack.c.b16 %v2034, %v2033
        %v2049 = vpack.c.b16 %v2036, %v2035
        %v2050 = vpack.c.b16 %v2038, %v2037
        %v2051 = vpack.c.b16 %v2040, %v2039
        %v2052 = vpack.c.b16 %v2042, %v2041
        %v2053 = vpack.c.b16 %v2044, %v2043
        %v2054 = vpack.c.b16 %v2046, %v2045
        %2063 = vmatprep.subr.bf16.mxu0 0
        %2064 = vmatpush1.bf16.msra.mxu0 %v2047
        %2065 = vmatprep.subr.bf16.mxu0 0
        %2066 = vmatpush1.bf16.msra.mxu0 %v2048
        %2067 = vmatprep.subr.bf16.mxu0 0
        %2068 = vmatpush1.bf16.msra.mxu0 %v2049
        %2069 = vmatprep.subr.bf16.mxu0 0
        %2070 = vmatpush1.bf16.msra.mxu0 %v2050
        %2071 = vmatprep.subr.bf16.mxu0 0
        %2072 = vmatpush1.bf16.msra.mxu0 %v2051
        %2073 = vmatprep.subr.bf16.mxu0 0
        %2074 = vmatpush1.bf16.msra.mxu0 %v2052
        %2075 = vmatprep.subr.bf16.mxu0 0
        %2076 = vmatpush1.bf16.msra.mxu0 %v2053
        %2077 = vmatprep.subr.bf16.mxu0 0
        %2078 = vmatpush1.bf16.msra.mxu0 %v2054
        %2079 = vmatprep.subr.bf16.mxu0 0
        %2080 = vmatpush1.bf16.msra.mxu0 0
        %2081 = vmatprep.subr.bf16.mxu0 0
        %2082 = vmatpush1.bf16.msra.mxu0 0
        %2083 = vmatprep.subr.bf16.mxu0 0
        %2084 = vmatpush1.bf16.msra.mxu0 0
        %2085 = vmatprep.subr.bf16.mxu0 0
        %2086 = vmatpush1.bf16.msra.mxu0 0
        %2087 = vmatprep.subr.bf16.mxu0 0
        %2088 = vmatpush1.bf16.msra.mxu0 0
        %2089 = vmatprep.subr.bf16.mxu0 0
        %2090 = vmatpush1.bf16.msra.mxu0 0
        %2091 = vmatprep.subr.bf16.mxu0 0
        %2092 = vmatpush1.bf16.msra.mxu0 0
        %2093 = vmatprep.subr.bf16.mxu0 0
        %2094 = vmatpush1.bf16.msra.mxu0 0
        %2095 = vmatprep.mubr.bf16.mxu0 0
        %2096 = vmatmul.mubr.bf16.gmra.mrb[0].mxu0 %v1997
        %v2097 = vpop.f32.mrb[0].mxu0
        %v2098 = vadd.f32 0.0, %v2097
        %v2099 = vpop.f32.mrb[0].mxu0
        %v2100 = vpop.f32.mrb[0].mxu0
        %v2101 = vpop.f32.mrb[0].mxu0
        %2102 = vdwg.mxu0
        %v2103 = vadd.f32 %v1892, %v2098
        %2104 = vmatprep.subr.bf16.mxu0 0
        %2105 = vmatpush1.bf16.xpose.msra.mxu0 %v1471
        %2106 = vmatprep.subr.bf16.mxu0 0
        %2107 = vmatpush1.bf16.xpose.msra.mxu0 0
        %2108 = vmatprep.subr.bf16.mxu0 0
        %2109 = vmatpush1.bf16.xpose.msra.mxu0 0
        %2110 = vmatprep.subr.bf16.mxu0 0
        %2111 = vmatpush1.bf16.xpose.msra.mxu0 0
        %2112 = vmatprep.subr.bf16.mxu0 0
        %2113 = vmatpush1.bf16.xpose.msra.mxu0 0
        %2114 = vmatprep.subr.bf16.mxu0 0
        %2115 = vmatpush1.bf16.xpose.msra.mxu0 0
        %2116 = vmatprep.subr.bf16.mxu0 0
        %2117 = vmatpush1.bf16.xpose.msra.mxu0 0
        %2118 = vmatprep.subr.bf16.mxu0 0
        %2119 = vmatpush1.bf16.xpose.msra.mxu0 0
        %2120 = vmatprep.subr.bf16.mxu0 0
        %2121 = vmatpush1.bf16.xpose.msra.mxu0 0
        %2122 = vmatprep.subr.bf16.mxu0 0
        %2123 = vmatpush1.bf16.xpose.msra.mxu0 0
        %2124 = vmatprep.subr.bf16.mxu0 0
        %2125 = vmatpush1.bf16.xpose.msra.mxu0 0
        %2126 = vmatprep.subr.bf16.mxu0 0
        %2127 = vmatpush1.bf16.xpose.msra.mxu0 0
        %2128 = vmatprep.subr.bf16.mxu0 0
        %2129 = vmatpush1.bf16.xpose.msra.mxu0 0
        %2130 = vmatprep.subr.bf16.mxu0 0
        %2131 = vmatpush1.bf16.xpose.msra.mxu0 0
        %2132 = vmatprep.subr.bf16.mxu0 0
        %2133 = vmatpush1.bf16.xpose.msra.mxu0 0
        %2134 = vmatprep.subr.bf16.mxu0 0
        %2135 = vmatpush1.bf16.xpose.msra.mxu0 0
        %2136 = vmatprep.mubr.bf16.mxu0 0
        %2137 = vmatmul.mubr.bf16.gmra.mrb[0].mxu0 %v877
        %v2138 = vpop.f32.mrb[0].mxu0
        %v2139 = vadd.f32 0.0, %v2138
        %v2140 = vpop.f32.mrb[0].mxu0
        %v2141 = vpop.f32.mrb[0].mxu0
        %v2142 = vpop.f32.mrb[0].mxu0
        %2143 = vdwg.mxu0
        %v2144 = vmul.f32 %v2139, 0.35355338
        %v2145 = vsel %vm1524, %v2144, -1e+30
        %v2146 = vsel %vm1526, %v2145, -inf
        %2147 = vmax.xlane.f32.xlu0 %v2146
        %v2148 = vpop.xlane.xlu0 %2147
        %v2149 = vsub.f32 %v2145, %v2148
        %v2150 = vmul.f32 %v2149, 1.442695
        %v2151 = vpow.pop %v2150
        %v2152 = vsel %vm1526, %v2151, 0.0
        %2153 = vadd.xlane.f32.xlu0 %v2152
        %v2154 = vpop.xlane.xlu0 %2153
        %v2155 = vrcp.pop %v2154
        %v2156 = vmul.f32 %v2151, %v2155
        %v2157 = vpack.c.bf16 %v2156, %v2156
        %v2159 = vsel %vm1526, %v2157, 0
        %v2162 = vsel %vm1542, %v1475, 0
        %2164 = vmatprep.subr.bf16.mxu0 0
        %2165 = vmatpush1.bf16.msra.mxu0 %v2162
        %2166 = vmatprep.subr.bf16.mxu0 0
        %2167 = vmatpush1.bf16.msra.mxu0 0
        %2168 = vmatprep.subr.bf16.mxu0 0
        %2169 = vmatpush1.bf16.msra.mxu0 0
        %2170 = vmatprep.subr.bf16.mxu0 0
        %2171 = vmatpush1.bf16.msra.mxu0 0
        %2172 = vmatprep.subr.bf16.mxu0 0
        %2173 = vmatpush1.bf16.msra.mxu0 0
        %2174 = vmatprep.subr.bf16.mxu0 0
        %2175 = vmatpush1.bf16.msra.mxu0 0
        %2176 = vmatprep.subr.bf16.mxu0 0
        %2177 = vmatpush1.bf16.msra.mxu0 0
        %2178 = vmatprep.subr.bf16.mxu0 0
        %2179 = vmatpush1.bf16.msra.mxu0 0
        %2180 = vmatprep.subr.bf16.mxu0 0
        %2181 = vmatpush1.bf16.msra.mxu0 0
        %2182 = vmatprep.subr.bf16.mxu0 0
        %2183 = vmatpush1.bf16.msra.mxu0 0
        %2184 = vmatprep.subr.bf16.mxu0 0
        %2185 = vmatpush1.bf16.msra.mxu0 0
        %2186 = vmatprep.subr.bf16.mxu0 0
        %2187 = vmatpush1.bf16.msra.mxu0 0
        %2188 = vmatprep.subr.bf16.mxu0 0
        %2189 = vmatpush1.bf16.msra.mxu0 0
        %2190 = vmatprep.subr.bf16.mxu0 0
        %2191 = vmatpush1.bf16.msra.mxu0 0
        %2192 = vmatprep.subr.bf16.mxu0 0
        %2193 = vmatpush1.bf16.msra.mxu0 0
        %2194 = vmatprep.subr.bf16.mxu0 0
        %2195 = vmatpush1.bf16.msra.mxu0 0
        %2196 = vmatprep.mubr.bf16.mxu0 0
        %2197 = vmatmul.mubr.bf16.gmra.mrb[0].mxu0 %v2159
        %v2198 = vpop.f32.mrb[0].mxu0
        %v2199 = vadd.f32 0.0, %v2198
        %v2200 = vpop.f32.mrb[0].mxu0
        %v2201 = vpop.f32.mrb[0].mxu0
        %v2202 = vpop.f32.mrb[0].mxu0
        %2203 = vdwg.mxu0
        %v2204 = vpack.c.bf16 %v2199, %v2199
        %s2205 = scalar_lea.vmem [#allocation11], 192
        %v2206 = vld [vmem:[%s2205] sm:$0xf]
        %v2207 = vld [vmem:[%s2205 + $0x4] sm:$0xf]
        %v2208 = vld [vmem:[%s2205 + $0x8] sm:$0xf]
        %v2209 = vld [vmem:[%s2205 + $0xc] sm:$0xf]
        %v2210 = vld [vmem:[%s2205 + $0x10] sm:$0xf]
        %v2211 = vld [vmem:[%s2205 + $0x14] sm:$0xf]
        %v2212 = vld [vmem:[%s2205 + $0x18] sm:$0xf]
        %v2213 = vld [vmem:[%s2205 + $0x1c] sm:$0xf]
        %v2214 = vld [vmem:[%s2205 + $0x20] sm:$0xf]
        %v2215 = vld [vmem:[%s2205 + $0x24] sm:$0xf]
        %v2216 = vld [vmem:[%s2205 + $0x28] sm:$0xf]
        %v2217 = vld [vmem:[%s2205 + $0x2c] sm:$0xf]
        %v2218 = vld [vmem:[%s2205 + $0x30] sm:$0xf]
        %v2219 = vld [vmem:[%s2205 + $0x34] sm:$0xf]
        %v2220 = vld [vmem:[%s2205 + $0x38] sm:$0xf]
        %v2221 = vld [vmem:[%s2205 + $0x3c] sm:$0xf]
        %v2238 = vunpack.c.l.b16 %v2206
        %v2239 = vunpack.c.l.b16 %v2207
        %v2240 = vunpack.c.l.b16 %v2208
        %v2241 = vunpack.c.l.b16 %v2209
        %v2242 = vunpack.c.l.b16 %v2210
        %v2243 = vunpack.c.l.b16 %v2211
        %v2244 = vunpack.c.l.b16 %v2212
        %v2245 = vunpack.c.l.b16 %v2213
        %v2246 = vunpack.c.l.b16 %v2214
        %v2247 = vunpack.c.l.b16 %v2215
        %v2248 = vunpack.c.l.b16 %v2216
        %v2249 = vunpack.c.l.b16 %v2217
        %v2250 = vunpack.c.l.b16 %v2218
        %v2251 = vunpack.c.l.b16 %v2219
        %v2252 = vunpack.c.l.b16 %v2220
        %v2253 = vunpack.c.l.b16 %v2221
        %v2254 = vpack.c.b16 %v2239, %v2238
        %v2255 = vpack.c.b16 %v2241, %v2240
        %v2256 = vpack.c.b16 %v2243, %v2242
        %v2257 = vpack.c.b16 %v2245, %v2244
        %v2258 = vpack.c.b16 %v2247, %v2246
        %v2259 = vpack.c.b16 %v2249, %v2248
        %v2260 = vpack.c.b16 %v2251, %v2250
        %v2261 = vpack.c.b16 %v2253, %v2252
        %2270 = vmatprep.subr.bf16.mxu0 0
        %2271 = vmatpush1.bf16.msra.mxu0 %v2254
        %2272 = vmatprep.subr.bf16.mxu0 0
        %2273 = vmatpush1.bf16.msra.mxu0 %v2255
        %2274 = vmatprep.subr.bf16.mxu0 0
        %2275 = vmatpush1.bf16.msra.mxu0 %v2256
        %2276 = vmatprep.subr.bf16.mxu0 0
        %2277 = vmatpush1.bf16.msra.mxu0 %v2257
        %2278 = vmatprep.subr.bf16.mxu0 0
        %2279 = vmatpush1.bf16.msra.mxu0 %v2258
        %2280 = vmatprep.subr.bf16.mxu0 0
        %2281 = vmatpush1.bf16.msra.mxu0 %v2259
        %2282 = vmatprep.subr.bf16.mxu0 0
        %2283 = vmatpush1.bf16.msra.mxu0 %v2260
        %2284 = vmatprep.subr.bf16.mxu0 0
        %2285 = vmatpush1.bf16.msra.mxu0 %v2261
        %2286 = vmatprep.subr.bf16.mxu0 0
        %2287 = vmatpush1.bf16.msra.mxu0 0
        %2288 = vmatprep.subr.bf16.mxu0 0
        %2289 = vmatpush1.bf16.msra.mxu0 0
        %2290 = vmatprep.subr.bf16.mxu0 0
        %2291 = vmatpush1.bf16.msra.mxu0 0
        %2292 = vmatprep.subr.bf16.mxu0 0
        %2293 = vmatpush1.bf16.msra.mxu0 0
        %2294 = vmatprep.subr.bf16.mxu0 0
        %2295 = vmatpush1.bf16.msra.mxu0 0
        %2296 = vmatprep.subr.bf16.mxu0 0
        %2297 = vmatpush1.bf16.msra.mxu0 0
        %2298 = vmatprep.subr.bf16.mxu0 0
        %2299 = vmatpush1.bf16.msra.mxu0 0
        %2300 = vmatprep.subr.bf16.mxu0 0
        %2301 = vmatpush1.bf16.msra.mxu0 0
        %2302 = vmatprep.mubr.bf16.mxu0 0
        %2303 = vmatmul.mubr.bf16.gmra.mrb[0].mxu0 %v2204
        %v2304 = vpop.f32.mrb[0].mxu0
        %v2305 = vadd.f32 0.0, %v2304
        %v2306 = vpop.f32.mrb[0].mxu0
        %v2307 = vpop.f32.mrb[0].mxu0
        %v2308 = vpop.f32.mrb[0].mxu0
        %2309 = vdwg.mxu0
        %v2310 = vadd.f32 %v2103, %v2305
        %v2311 = vld [vmem:[%s10] sm:$0x1]
        %v2313 = vlaneseq
        %v2314 = vshrl.u32 %v2313, 7
        %v2315 = vsub.s32 0, %v2314
        %v2316 = vrot.slane %v2311, %v2315
        %v2318 = vadd.f32 %v2310, %v2316
        %2319 = vst [vmem:[%s522] sm:$0xff] %v2318
        %s2320 = sand.u32 %s303, 1
        %s2321 = scalar_lea.sflag [#allocation4], %s2320
        %s2322 = sand.u32 %s303, 1
        %s2323 = smul.addr %s2322, 8
        %s2324 = scalar_lea.vmem [#allocation13], %s2323
        // Predicated region
        $region89: #{tpu_custom_call.1} parent=63 // pred_check
          %p2325 = pneg %p313
        $region90: #{tpu_custom_call.1} parent=63 // pred_check_branch
          %2327 = sbr.rel (%p2325) target = $region92
        $region91: #{tpu_custom_call.1} parent=63 // pred_region
          %s2329 = ssub.s32 128, 128
          %2330 = vsyncadd %s2321, %s2329
          %s2331 = sadd.s32 %s38, %s37
          %s2332 = smul.addr %s2331, 128
          %s2333 = scalar_lea.hbm %s11, %s2332
          %s2335 = sshll.u32 %s2324, 4
          %s2336 = int_to_ptr.vmem [resolvable:$true] %s2335
          %2338 = dma.vmem_to_hbm [thread:$0]  %s2336, 128, %s2333, %s2321
        $region92: #{tpu_custom_call.1} parent=63 // pred_fallthru
          _
      $region64: #{tpu_custom_call.1} parent=5 // pred_fallthru
        _
      %p2339 = scmp.le.s32.totalorder 2, %s28
      // Predicated region
      $region93: #{tpu_custom_call.1} parent=5 // pred_check
        %p2340 = pneg %p2339
      $region94: #{tpu_custom_call.1} parent=5 // pred_check_branch
        %2342 = sbr.rel (%p2340) target = $region96
      $region95: #{tpu_custom_call.1} parent=5 // pred_region
        %s2343 = ssub.s32 %s28, 2
        // Predicated region
        $region97: #{tpu_custom_call.1} parent=95 // pred_check
          %p2344 = pneg %p319
        $region98: #{tpu_custom_call.1} parent=95 // pred_check_branch
          %2346 = sbr.rel (%p2344) target = $region100
        $region99: #{tpu_custom_call.1} parent=95 // pred_region
          %s2347 = sand.u32 %s304, 1
          %s2348 = scalar_lea.sflag [#allocation4], %s2347
          %s2349 = sand.u32 %s304, 1
          %s2350 = smul.addr %s2349, 8
          %s2351 = scalar_lea.vmem [#allocation13], %s2350
          %2352 = dma.done %s2348, 128
        $region100: #{tpu_custom_call.1} parent=95 // pred_fallthru
          _
      $region96: #{tpu_custom_call.1} parent=5 // pred_fallthru
        _
    $region6: #{tpu_custom_call.1} parent=1 // loop_footer
      %s32 = sadd.s32 1, %s28
    $region7: #{tpu_custom_call.1} parent=1 // loop_footer_branch
      %27 = sbr.rel target = $region3
    $region8: #{tpu_custom_call.1} parent=1 // loop_exit
      _
    %2353 = vsyncpa [#allocation3], 1
    %s2354 = scalar_lea.sflag [#allocation3], 1
    %2355 = vsyncpa %s2354, 1
    %2356 = vsyncpa [#allocation6], 1
    %s2357 = scalar_lea.sflag [#allocation6], 1
    %2358 = vsyncpa %s2357, 1
    %2359 = vsyncpa [#allocation9], 1
    %2360 = vsyncpa [#allocation12], 1
    %2361 = vsyncpa [#allocation4], 1
    %s2362 = scalar_lea.sflag [#allocation4], 1
    %2363 = vsyncpa %s2362, 1

</llo_original>
